<compile_context>
chip_gen: v6e
topology: v6e:2x2x1
jax: 0.10.0
libtpu: 0.0.40
codegen_flags: <defaults>
</compile_context>

<pallas_src>
import functools

import jax
import jax.numpy as jnp
from jax import lax
from jax.experimental import pallas as pl
from jax.experimental.pallas import tpu as pltpu


# ---------------------------------------------------------------------------
# Fused kernel: 3-phase grid (phase, batch-tile).
#   refs: x_ref (TB,S,D), beta_ref (1,D), gamma_ref (1,1), out_ref (TB,S,D),
#   scratch: mean_ref (1,D) f32, var_ref (1,1) f32 (holds the final scale after phase 1).
# ---------------------------------------------------------------------------
def _lbn_kernel(x_ref, beta_ref, gamma_ref, out_ref, mean_ref, var_ref,
                *, c, eps, num_b, n_total, out_scale):
    p = pl.program_id(0)
    b = pl.program_id(1)
    nb = pl.num_programs(1)

    TB, S, D = x_ref.shape
    rows = TB * S
    sqrt_k = c ** 0.5
    inv_c = 1.0 / c
    inv_sqrt_k = 1.0 / sqrt_k

    # origin = (sqrt(c), 0, ..., 0) — tiny (1, D) constant, built per step (negligible).
    lane = lax.broadcasted_iota(jnp.int32, (1, D), 1)
    origin = jnp.where(lane == 0, sqrt_k, 0.0).astype(jnp.float32)

    # ------------------------------------------------------------------ init
    @pl.when(jnp.logical_and(p == 0, b == 0))
    def _init():
        mean_ref[...] = jnp.zeros_like(mean_ref)
        var_ref[...] = jnp.zeros_like(var_ref)

    # -------------------------------------------------- phase 0: centroid
    @pl.when(p == 0)
    def _phase0():
        x = x_ref[...].astype(jnp.float32)                       # (TB, S, D)
        ave = jnp.mean(x, axis=1, keepdims=True)                 # (TB, 1, D) per-batch average
        a0 = ave[..., 0:1]
        ip = jnp.sum(ave * ave, axis=-1, keepdims=True) - 2.0 * a0 * a0   # <ave, ave>_L
        inv_norm = lax.rsqrt(jnp.maximum(jnp.abs(ip), 1e-8))
        mean_b = (sqrt_k * inv_norm) * ave                       # per-batch centroid
        mean_ref[...] += jnp.sum(mean_b, axis=0, keepdims=True)[0]        # (1, D)

    @pl.when(jnp.logical_and(p == 0, b == nb - 1))
    def _finalize_mean():
        ave2 = mean_ref[...] * (1.0 / num_b)                     # centroid of centroids
        a0 = ave2[:, 0:1]
        ip2 = jnp.sum(ave2 * ave2, axis=-1, keepdims=True) - 2.0 * a0 * a0
        inv_norm2 = lax.rsqrt(jnp.maximum(jnp.abs(ip2), 1e-8))
        mean_ref[...] = (sqrt_k * inv_norm2) * ave2

    # shared: x_t = transp0back(mean, logmap(mean, x)), recomputed in phases 1 and 2
    def _compute_xt():
        x = x_ref[...].astype(jnp.float32).reshape(rows, D)      # (rows, D)
        mean = mean_ref[...]                                     # (1, D)
        m0 = mean[:, 0:1]                                        # (1, 1)
        x0 = x[:, 0:1]                                           # (rows, 1)
        # Minkowski <x, mean>_L = sum(x*mean) - 2*x0*m0
        ip = jnp.sum(x * mean, axis=-1, keepdims=True) - 2.0 * x0 * m0
        alpha_raw = -ip * inv_c
        alpha = jnp.maximum(alpha_raw, 1.0)
        # dist = sqrt_k * arccosh(alpha)
        dist = sqrt_k * jnp.log(alpha + jnp.sqrt(jnp.maximum(alpha * alpha - 1.0, 1e-15)))
        nomin = x - alpha_raw * mean                             # = x + (ip/c) * mean
        n0 = nomin[:, 0:1]
        den2 = jnp.sum(nomin * nomin, axis=-1, keepdims=True) - 2.0 * n0 * n0
        s = dist * lax.rsqrt(jnp.maximum(den2, 1e-8))            # (rows, 1)
        u = nomin * s                                            # tangent at mean
        u0 = n0 * s
        # transp0back(mean, u): parallel transport mean -> origin
        coef = u0 * (-sqrt_k / (c + sqrt_k * m0))                # (rows, 1)
        return u + coef * (mean + origin)                        # tangent at origin

    # -------------------------------------- phase 1: Frechet variance (sum of norms)
    @pl.when(p == 1)
    def _phase1():
        x_t = _compute_xt()
        norms = jnp.sqrt(jnp.sum(x_t * x_t, axis=-1, keepdims=True))      # (rows, 1)
        var_ref[...] += jnp.sum(norms, axis=0, keepdims=True)             # (1, 1)

    @pl.when(jnp.logical_and(p == 1, b == nb - 1))
    def _finalize_var():
        var = var_ref[...] * (1.0 / n_total)
        var_ref[...] = gamma_ref[...] / (var + eps)              # store scale = gamma/(var+eps)

    # ------------------- phase 2: rescale, transport to beta, expmap(beta, .), write out
    @pl.when(p == 2)
    def _phase2():
        x_t = _compute_xt()
        scale = var_ref[...]                                     # (1, 1)
        v = x_t * scale
        beta = beta_ref[...]                                     # (1, D)
        b0 = beta[:, 0:1]
        v0 = v[:, 0:1]
        # transp0(beta, v)
        ipb = jnp.sum(v * beta, axis=-1, keepdims=True) - 2.0 * v0 * b0
        coef2 = ipb * (1.0 / (c + sqrt_k * b0))
        v2 = v + coef2 * (beta + origin)
        # expmap(beta, v2) — cosh/sinh via exp (overflows for theta >~ 88, same as reference)
        w0 = v2[:, 0:1]
        nrm2 = jnp.sum(v2 * v2, axis=-1, keepdims=True) - 2.0 * w0 * w0
        nrm = jnp.sqrt(jnp.maximum(nrm2, 1e-8))
        e = jnp.exp(nrm * inv_sqrt_k)
        einv = 1.0 / e
        cosh_t = 0.5 * (e + einv)
        sinh_t = 0.5 * (e - einv)
        out = cosh_t * beta + (sqrt_k * sinh_t / nrm) * v2
        if out_scale is not None:                                # manifold_out projection
            out = out * out_scale
        out_ref[...] = out.reshape(TB, S, D).astype(out_ref.dtype)


# ---------------------------------------------------------------------------
# Wrapper
# ---------------------------------------------------------------------------
def _choose_block_batches(num_batches, bytes_per_batch, max_resident_bytes, max_block_bytes):
    """Largest TB dividing num_batches that respects the VMEM block budget."""
    if num_batches * bytes_per_batch <= max_resident_bytes:
        return num_batches                                       # whole tensor resident -> 2 HBM passes
    tb = 1
    for d in range(1, num_batches + 1):
        if num_batches % d == 0 and d * bytes_per_batch <= max_block_bytes:
            tb = d
    return tb


def lorentz_batch_norm(x, beta, gamma, c=1.0, eps=1e-5, manifold_out_c=None,
                       max_resident_bytes=2 * 1024 * 1024,
                       max_block_bytes=1 * 1024 * 1024):
    """Training-mode forward of LorentzBatchNorm. x: [B, S, D] or [N, D] (time coord first)."""
    assert x.ndim in (2, 3), "Wrong input shape in Lorentz batch normalization."
    orig_ndim = x.ndim
    if x.ndim == 2:
        # [N, D] == [1, N, D]: second-stage centroid is (numerically) the identity.
        x = x[None]
    B, S, D = x.shape
    out_dtype = x.dtype

    beta2 = jnp.reshape(beta, (1, D)).astype(jnp.float32)
    gamma2 = jnp.reshape(gamma, (1, 1)).astype(jnp.float32)
    c = float(c)
    out_scale = None if manifold_out_c is None else (float(manifold_out_c) / c) ** 0.5

    bytes_per_batch = S * D * 4                                  # f32 compute footprint per batch
    TB = _choose_block_batches(B, bytes_per_batch, max_resident_bytes, max_block_bytes)
    NB = B // TB

    kernel = functools.partial(
        _lbn_kernel, c=c, eps=float(eps), num_b=B, n_total=B * S, out_scale=out_scale)

    out = pl.pallas_call(
        kernel,
        grid=(3, NB),                                            # (phase, batch tile)
        in_specs=[
            pl.BlockSpec((TB, S, D), lambda p, b: (b, 0, 0)),    # x (re-read per phase; once if NB==1)
            pl.BlockSpec((1, D), lambda p, b: (0, 0)),           # beta (resident)
            pl.BlockSpec((1, 1), lambda p, b: (0, 0)),           # gamma (resident)
        ],
        # Output is only produced in phase 2; keep its block index frozen at 0 during the
        # reduction phases so no spurious HBM writebacks happen.
        out_specs=pl.BlockSpec((TB, S, D),
                               lambda p, b: (jnp.where(p == 2, b, 0), 0, 0)),
        out_shape=jax.ShapeDtypeStruct((B, S, D), out_dtype),
        scratch_shapes=[
            pltpu.VMEM((1, D), jnp.float32),                     # mean (Lorentzian centroid)
            pltpu.VMEM((1, 1), jnp.float32),                     # var accumulator -> scale
        ],
        compiler_params=pltpu.CompilerParams(
            # phase axis is sequential; inner axis carries reductions in phases 0/1.
            dimension_semantics=("arbitrary", "arbitrary"),
            vmem_limit_bytes=48 * 1024 * 1024,                   # headroom; usage stays << 28 MiB (v7x-safe)
        ),
    )(x, beta2, gamma2)

    if orig_ndim == 2:
        out = out[0]
    return out


# ---------------------------------------------------------------------------
# Pure-JAX reference (same math, full arrays) for verification.
# ---------------------------------------------------------------------------
def _mink_inner_ref(u, v):
    return jnp.sum(u[..., 1:] * v[..., 1:], axis=-1, keepdims=True) - u[..., :1] * v[..., :1]


def reference_lorentz_batch_norm(x, beta, gamma, c=1.0, eps=1e-5):
    c = jnp.float32(c)
    sqrt_k = jnp.sqrt(c)

    def centroid(pts):
        ave = jnp.mean(pts, axis=-2)
        denom = jnp.sqrt(jnp.maximum(jnp.abs(_mink_inner_ref(ave, ave)), 1e-8))
        return sqrt_k * ave / denom

    mean = centroid(x)
    if x.ndim == 3:
        mean = centroid(mean)

    # logmap(mean, x)
    ip = _mink_inner_ref(mean, x)
    arg = jnp.maximum(-ip / c, 1.0)
    dist = sqrt_k * jnp.log(arg + jnp.sqrt(jnp.maximum(arg * arg - 1.0, 1e-15)))
    nomin = x + (ip / c) * mean
    denom = jnp.sqrt(jnp.maximum(_mink_inner_ref(nomin, nomin), 1e-8))
    u = dist * nomin / denom

    # transp0back(mean, u)
    origin_m = jnp.zeros_like(mean).at[..., 0].set(sqrt_k)
    coef = (-sqrt_k * u[..., :1]) / (c + sqrt_k * mean[..., :1])
    x_t = u + coef * (mean + origin_m)

    # Frechet variance (mean of norms)
    var = jnp.mean(jnp.sqrt(jnp.sum(x_t * x_t, axis=-1)))
    x_t = x_t * (gamma / (var + eps))

    # transp0(beta, x_t) + expmap(beta, .)
    origin_b = jnp.zeros_like(beta).at[..., 0].set(sqrt_k)
    coef2 = _mink_inner_ref(beta, x_t) / (c + sqrt_k * beta[..., :1])
    v2 = x_t + coef2 * (beta + origin_b)
    nrm = jnp.sqrt(jnp.maximum(_mink_inner_ref(v2, v2), 1e-8))
    theta = nrm / sqrt_k
    return jnp.cosh(theta) * beta + sqrt_k * jnp.sinh(theta) * v2 / nrm


# ---------------------------------------------------------------------------
if __name__ == "__main__":
    key = jax.random.PRNGKey(0)
    F = 15                      # num_features (spatial dims)
    D = F + 1                   # ambient Lorentz dim (time + spatial)

    def make_points(k, shape_prefix, c):
        xs = 0.5 * jax.random.normal(k, shape_prefix + (F,), dtype=jnp.float32)
        x0 = jnp.sqrt(c + jnp.sum(xs * xs, axis=-1, keepdims=True))
        return jnp.concatenate([x0, xs], axis=-1)

    def make_beta(k, c):
        bs = 0.3 * jax.random.normal(k, (F,), dtype=jnp.float32)
        b0 = jnp.sqrt(c + jnp.sum(bs * bs, keepdims=True))
        return jnp.concatenate([b0, bs], axis=-1)

    k1, k2, k3, kb = jax.random.split(key, 4)
    gamma = jnp.asarray([1.3], jnp.float32)

    # --- test 1: small 3-D input, resident path (NB == 1, two HBM passes) ---
    c1 = 1.0
    x1 = make_points(k1, (4, 8), c1)
    beta1 = make_beta(kb, c1)
    out1 = jax.block_until_ready(lorentz_batch_norm(x1, beta1, gamma, c=c1))
    ref1 = reference_lorentz_batch_norm(x1, beta1, gamma, c=c1)
    assert out1.shape == x1.shape, (out1.shape, x1.shape)
    assert jnp.allclose(out1, ref1, atol=2e-3, rtol=2e-3), \
        float(jnp.max(jnp.abs(out1 - ref1)))

    # --- test 2: force the tiled path (NB > 1), curvature c != 1 ------------
    c2 = 2.0
    x2 = make_points(k2, (8, 128), c2)
    beta2 = make_beta(kb, c2)
    out2 = jax.block_until_ready(
        lorentz_batch_norm(x2, beta2, gamma, c=c2,
                           max_resident_bytes=16 * 1024, max_block_bytes=16 * 1024))
    ref2 = reference_lorentz_batch_norm(x2, beta2, gamma, c=c2)
    assert out2.shape == x2.shape, (out2.shape, x2.shape)
    assert jnp.allclose(out2, ref2, atol=2e-3, rtol=2e-3), \
        float(jnp.max(jnp.abs(out2 - ref2)))

    # --- test 3: 2-D input + manifold_out projection -------------------------
    c3 = 1.0
    x3 = make_points(k3, (64,), c3)
    beta3 = make_beta(kb, c3)
    out3 = jax.block_until_ready(
        lorentz_batch_norm(x3, beta3, gamma, c=c3, manifold_out_c=2.0))
    ref3 = reference_lorentz_batch_norm(x3, beta3, gamma, c=c3) * (2.0 / c3) ** 0.5
    assert out3.shape == x3.shape, (out3.shape, x3.shape)
    assert jnp.allclose(out3, ref3, atol=2e-3, rtol=2e-3), \
        float(jnp.max(jnp.abs(out3 - ref3)))

    print("KERNEL_OK")
</pallas_src>

<mosaic_0001>
module attributes {stable_mosaic.version = 11 : i64} {
  func.func @_lbn_kernel(%arg0: i32, %arg1: i32, %arg2: memref<4x8x16xf32, #tpu.memory_space<vmem>>, %arg3: memref<1x16xf32, #tpu.memory_space<vmem>>, %arg4: memref<1x1xf32, #tpu.memory_space<vmem>>, %arg5: memref<4x8x16xf32, #tpu.memory_space<vmem>>, %arg6: memref<1x16xf32, #tpu.memory_space<vmem>>, %arg7: memref<1x1xf32, #tpu.memory_space<vmem>>) attributes {dimension_semantics = [#tpu.dimension_semantics<arbitrary>, #tpu.dimension_semantics<arbitrary>], iteration_bounds = array<i64: 3, 1>, scalar_prefetch = 0 : i64, scratch_operands = 2 : i64, tpu.core_type = #tpu.core_type<tc>, window_params = [{transform_indices = @transform_0, window_bounds = array<i64: 4, 8, 16>}, {pipeline_mode = #tpu.pipeline_mode<synchronous>, transform_indices = @transform_1, window_bounds = array<i64: 1, 16>}, {pipeline_mode = #tpu.pipeline_mode<synchronous>, transform_indices = @transform_2, window_bounds = array<i64: 1, 1>}, {transform_indices = @transform_3, window_bounds = array<i64: 4, 8, 16>}]} {
    %0 = tpu.iota {dimensions = array<i32: 1>} : vector<1x16xi32>
    %c0_i32 = arith.constant 0 : i32
    %1 = vector.broadcast %c0_i32 : i32 to vector<1x16xi32>
    %2 = arith.cmpi eq, %0, %1 : vector<1x16xi32>
    %cst = arith.constant 1.000000e+00 : f32
    %cst_0 = arith.constant 0.000000e+00 : f32
    %3 = vector.broadcast %cst : f32 to vector<1x16xf32>
    %4 = vector.broadcast %cst_0 : f32 to vector<1x16xf32>
    %5 = arith.select %2, %3, %4 : vector<1x16xi1>, vector<1x16xf32>
    %c0_i32_1 = arith.constant 0 : i32
    %6 = arith.cmpi eq, %arg0, %c0_i32_1 : i32
    %c0_i32_2 = arith.constant 0 : i32
    %7 = arith.cmpi eq, %arg1, %c0_i32_2 : i32
    %8 = arith.andi %6, %7 : i1
    %9 = arith.extui %8 : i1 to i32
    %c0_i32_3 = arith.constant 0 : i32
    %10 = arith.cmpi ne, %9, %c0_i32_3 : i32
    scf.if %10 {
      %cst_14 = arith.constant 0.000000e+00 : f32
      %30 = vector.broadcast %cst_14 : f32 to vector<1x16xf32>
      %c0 = arith.constant 0 : index
      %c0_15 = arith.constant 0 : index
      %31 = vector.load %arg6[%c0, %c0_15] : memref<1x16xf32, #tpu.memory_space<vmem>>, vector<1x16xf32>
      tpu.vector_store %arg6[%c0, %c0_15], %30 {strides = array<i32>} : memref<1x16xf32, #tpu.memory_space<vmem>>, vector<1x16xf32>,
      %cst_16 = arith.constant 0.000000e+00 : f32
      %32 = vector.broadcast %cst_16 : f32 to vector<1x1xf32>
      %c0_17 = arith.constant 0 : index
      %c0_18 = arith.constant 0 : index
      %33 = vector.load %arg7[%c0_17, %c0_18] : memref<1x1xf32, #tpu.memory_space<vmem>>, vector<1x1xf32>
      tpu.vector_store %arg7[%c0_17, %c0_18], %32 {strides = array<i32>} : memref<1x1xf32, #tpu.memory_space<vmem>>, vector<1x1xf32>,
    } else {
    }
    %c0_i32_4 = arith.constant 0 : i32
    %11 = arith.cmpi eq, %arg0, %c0_i32_4 : i32
    %12 = arith.extui %11 : i1 to i32
    %c0_i32_5 = arith.constant 0 : i32
    %13 = arith.cmpi ne, %12, %c0_i32_5 : i32
    scf.if %13 {
      %c0 = arith.constant 0 : index
      %c0_14 = arith.constant 0 : index
      %c0_15 = arith.constant 0 : index
      %30 = vector.load %arg2[%c0, %c0_14, %c0_15] : memref<4x8x16xf32, #tpu.memory_space<vmem>>, vector<4x8x16xf32>
      %cst_16 = arith.constant dense<0.000000e+00> : vector<4x16xf32>
      %31 = vector.multi_reduction <add>, %30, %cst_16 [1] : vector<4x8x16xf32> to vector<4x16xf32>
      %32 = vector.shape_cast %31 : vector<4x16xf32> to vector<4x1x16xf32>
      %cst_17 = arith.constant 8.000000e+00 : f32
      %33 = vector.broadcast %cst_17 : f32 to vector<4x1x16xf32>
      %34 = arith.divf %32, %33 : vector<4x1x16xf32>
      %35 = vector.extract_strided_slice %34 {offsets = [0, 0, 0], sizes = [4, 1, 1], strides = [1, 1, 1]} : vector<4x1x16xf32> to vector<4x1x1xf32>
      %36 = arith.mulf %34, %34 : vector<4x1x16xf32>
      %cst_18 = arith.constant dense<0.000000e+00> : vector<4x1xf32>
      %37 = vector.multi_reduction <add>, %36, %cst_18 [2] : vector<4x1x16xf32> to vector<4x1xf32>
      %38 = vector.shape_cast %37 : vector<4x1xf32> to vector<4x1x1xf32>
      %cst_19 = arith.constant 2.000000e+00 : f32
      %39 = vector.broadcast %cst_19 : f32 to vector<4x1x1xf32>
      %40 = arith.mulf %39, %35 : vector<4x1x1xf32>
      %41 = arith.mulf %40, %35 : vector<4x1x1xf32>
      %42 = arith.subf %38, %41 : vector<4x1x1xf32>
      %43 = math.absf %42 : vector<4x1x1xf32>
      %cst_20 = arith.constant 9.99999993E-9 : f32
      %44 = vector.broadcast %cst_20 : f32 to vector<4x1x1xf32>
      %45 = arith.maximumf %43, %44 : vector<4x1x1xf32>
      %46 = math.rsqrt %45 : vector<4x1x1xf32>
      %cst_21 = arith.constant 1.000000e+00 : f32
      %47 = vector.broadcast %cst_21 : f32 to vector<4x1x1xf32>
      %48 = arith.mulf %47, %46 : vector<4x1x1xf32>
      %49 = vector.broadcast %48 : vector<4x1x1xf32> to vector<4x1x16xf32>
      %50 = arith.mulf %49, %34 : vector<4x1x16xf32>
      %c0_22 = arith.constant 0 : index
      %c0_23 = arith.constant 0 : index
      %51 = vector.load %arg6[%c0_22, %c0_23] : memref<1x16xf32, #tpu.memory_space<vmem>>, vector<1x16xf32>
      %cst_24 = arith.constant dense<0.000000e+00> : vector<1x16xf32>
      %52 = vector.multi_reduction <add>, %50, %cst_24 [0] : vector<4x1x16xf32> to vector<1x16xf32>
      %53 = vector.shape_cast %52 : vector<1x16xf32> to vector<1x1x16xf32>
      %54 = vector.shape_cast %53 : vector<1x1x16xf32> to vector<1x16xf32>
      %55 = arith.addf %51, %54 : vector<1x16xf32>
      %c0_25 = arith.constant 0 : index
      %c0_26 = arith.constant 0 : index
      %56 = vector.load %arg6[%c0_25, %c0_26] : memref<1x16xf32, #tpu.memory_space<vmem>>, vector<1x16xf32>
      tpu.vector_store %arg6[%c0_25, %c0_26], %55 {strides = array<i32>} : memref<1x16xf32, #tpu.memory_space<vmem>>, vector<1x16xf32>,
    } else {
    }
    %c0_i32_6 = arith.constant 0 : i32
    %14 = arith.cmpi eq, %arg0, %c0_i32_6 : i32
    %c0_i32_7 = arith.constant 0 : i32
    %15 = arith.cmpi eq, %arg1, %c0_i32_7 : i32
    %16 = arith.andi %14, %15 : i1
    %17 = arith.extui %16 : i1 to i32
    %c0_i32_8 = arith.constant 0 : i32
    %18 = arith.cmpi ne, %17, %c0_i32_8 : i32
    scf.if %18 {
      %c0 = arith.constant 0 : index
      %c0_14 = arith.constant 0 : index
      %30 = vector.load %arg6[%c0, %c0_14] : memref<1x16xf32, #tpu.memory_space<vmem>>, vector<1x16xf32>
      %cst_15 = arith.constant 2.500000e-01 : f32
      %31 = vector.broadcast %cst_15 : f32 to vector<1x16xf32>
      %32 = arith.mulf %30, %31 : vector<1x16xf32>
      %33 = vector.extract_strided_slice %32 {offsets = [0, 0], sizes = [1, 1], strides = [1, 1]} : vector<1x16xf32> to vector<1x1xf32>
      %34 = arith.mulf %32, %32 : vector<1x16xf32>
      %cst_16 = arith.constant dense<0.000000e+00> : vector<1xf32>
      %35 = vector.multi_reduction <add>, %34, %cst_16 [1] : vector<1x16xf32> to vector<1xf32>
      %36 = vector.shape_cast %35 : vector<1xf32> to vector<1x1xf32>
      %cst_17 = arith.constant 2.000000e+00 : f32
      %37 = vector.broadcast %cst_17 : f32 to vector<1x1xf32>
      %38 = arith.mulf %37, %33 : vector<1x1xf32>
      %39 = arith.mulf %38, %33 : vector<1x1xf32>
      %40 = arith.subf %36, %39 : vector<1x1xf32>
      %41 = math.absf %40 : vector<1x1xf32>
      %cst_18 = arith.constant 9.99999993E-9 : f32
      %42 = vector.broadcast %cst_18 : f32 to vector<1x1xf32>
      %43 = arith.maximumf %41, %42 : vector<1x1xf32>
      %44 = math.rsqrt %43 : vector<1x1xf32>
      %cst_19 = arith.constant 1.000000e+00 : f32
      %45 = vector.broadcast %cst_19 : f32 to vector<1x1xf32>
      %46 = arith.mulf %45, %44 : vector<1x1xf32>
      %47 = vector.broadcast %46 : vector<1x1xf32> to vector<1x16xf32>
      %48 = arith.mulf %47, %32 : vector<1x16xf32>
      %c0_20 = arith.constant 0 : index
      %c0_21 = arith.constant 0 : index
      %49 = vector.load %arg6[%c0_20, %c0_21] : memref<1x16xf32, #tpu.memory_space<vmem>>, vector<1x16xf32>
      tpu.vector_store %arg6[%c0_20, %c0_21], %48 {strides = array<i32>} : memref<1x16xf32, #tpu.memory_space<vmem>>, vector<1x16xf32>,
    } else {
    }
    %c1_i32 = arith.constant 1 : i32
    %19 = arith.cmpi eq, %arg0, %c1_i32 : i32
    %20 = arith.extui %19 : i1 to i32
    %c0_i32_9 = arith.constant 0 : i32
    %21 = arith.cmpi ne, %20, %c0_i32_9 : i32
    scf.if %21 {
      %c0 = arith.constant 0 : index
      %c0_14 = arith.constant 0 : index
      %c0_15 = arith.constant 0 : index
      %30 = vector.load %arg2[%c0, %c0_14, %c0_15] : memref<4x8x16xf32, #tpu.memory_space<vmem>>, vector<4x8x16xf32>
      %31 = vector.shape_cast %30 : vector<4x8x16xf32> to vector<32x16xf32>
      %c0_16 = arith.constant 0 : index
      %c0_17 = arith.constant 0 : index
      %32 = vector.load %arg6[%c0_16, %c0_17] : memref<1x16xf32, #tpu.memory_space<vmem>>, vector<1x16xf32>
      %33 = vector.extract_strided_slice %32 {offsets = [0, 0], sizes = [1, 1], strides = [1, 1]} : vector<1x16xf32> to vector<1x1xf32>
      %34 = vector.extract_strided_slice %31 {offsets = [0, 0], sizes = [32, 1], strides = [1, 1]} : vector<32x16xf32> to vector<32x1xf32>
      %35 = vector.broadcast %32 : vector<1x16xf32> to vector<32x16xf32>
      %36 = arith.mulf %31, %35 : vector<32x16xf32>
      %cst_18 = arith.constant dense<0.000000e+00> : vector<32xf32>
      %37 = vector.multi_reduction <add>, %36, %cst_18 [1] : vector<32x16xf32> to vector<32xf32>
      %38 = vector.shape_cast %37 : vector<32xf32> to vector<32x1xf32>
      %cst_19 = arith.constant 2.000000e+00 : f32
      %39 = vector.broadcast %cst_19 : f32 to vector<32x1xf32>
      %40 = arith.mulf %39, %34 : vector<32x1xf32>
      %41 = vector.broadcast %33 : vector<1x1xf32> to vector<32x1xf32>
      %42 = arith.mulf %40, %41 : vector<32x1xf32>
      %43 = arith.subf %38, %42 : vector<32x1xf32>
      %cst_20 = arith.constant 0.000000e+00 : f32
      %44 = vector.broadcast %cst_20 : f32 to vector<32x1xf32>
      %45 = arith.subf %44, %43 : vector<32x1xf32>
      %cst_21 = arith.constant 1.000000e+00 : f32
      %46 = vector.broadcast %cst_21 : f32 to vector<32x1xf32>
      %47 = arith.mulf %45, %46 : vector<32x1xf32>
      %cst_22 = arith.constant 1.000000e+00 : f32
      %48 = vector.broadcast %cst_22 : f32 to vector<32x1xf32>
      %49 = arith.maximumf %47, %48 : vector<32x1xf32>
      %50 = arith.mulf %49, %49 : vector<32x1xf32>
      %cst_23 = arith.constant 1.000000e+00 : f32
      %51 = vector.broadcast %cst_23 : f32 to vector<32x1xf32>
      %52 = arith.subf %50, %51 : vector<32x1xf32>
      %cst_24 = arith.constant 1.000000e-15 : f32
      %53 = vector.broadcast %cst_24 : f32 to vector<32x1xf32>
      %54 = arith.maximumf %52, %53 : vector<32x1xf32>
      %55 = math.sqrt %54 : vector<32x1xf32>
      %56 = arith.addf %49, %55 : vector<32x1xf32>
      %57 = math.log %56 : vector<32x1xf32>
      %cst_25 = arith.constant 1.000000e+00 : f32
      %58 = vector.broadcast %cst_25 : f32 to vector<32x1xf32>
      %59 = arith.mulf %58, %57 : vector<32x1xf32>
      %60 = vector.broadcast %47 : vector<32x1xf32> to vector<32x16xf32>
      %61 = vector.broadcast %32 : vector<1x16xf32> to vector<32x16xf32>
      %62 = arith.mulf %60, %61 : vector<32x16xf32>
      %63 = arith.subf %31, %62 : vector<32x16xf32>
      %64 = vector.extract_strided_slice %63 {offsets = [0, 0], sizes = [32, 1], strides = [1, 1]} : vector<32x16xf32> to vector<32x1xf32>
      %65 = arith.mulf %63, %63 : vector<32x16xf32>
      %cst_26 = arith.constant dense<0.000000e+00> : vector<32xf32>
      %66 = vector.multi_reduction <add>, %65, %cst_26 [1] : vector<32x16xf32> to vector<32xf32>
      %67 = vector.shape_cast %66 : vector<32xf32> to vector<32x1xf32>
      %cst_27 = arith.constant 2.000000e+00 : f32
      %68 = vector.broadcast %cst_27 : f32 to vector<32x1xf32>
      %69 = arith.mulf %68, %64 : vector<32x1xf32>
      %70 = arith.mulf %69, %64 : vector<32x1xf32>
      %71 = arith.subf %67, %70 : vector<32x1xf32>
      %cst_28 = arith.constant 9.99999993E-9 : f32
      %72 = vector.broadcast %cst_28 : f32 to vector<32x1xf32>
      %73 = arith.maximumf %71, %72 : vector<32x1xf32>
      %74 = math.rsqrt %73 : vector<32x1xf32>
      %75 = arith.mulf %59, %74 : vector<32x1xf32>
      %76 = vector.broadcast %75 : vector<32x1xf32> to vector<32x16xf32>
      %77 = arith.mulf %63, %76 : vector<32x16xf32>
      %78 = arith.mulf %64, %75 : vector<32x1xf32>
      %cst_29 = arith.constant 1.000000e+00 : f32
      %79 = vector.broadcast %cst_29 : f32 to vector<1x1xf32>
      %80 = arith.mulf %79, %33 : vector<1x1xf32>
      %cst_30 = arith.constant 1.000000e+00 : f32
      %81 = vector.broadcast %cst_30 : f32 to vector<1x1xf32>
      %82 = arith.addf %81, %80 : vector<1x1xf32>
      %cst_31 = arith.constant -1.000000e+00 : f32
      %83 = vector.broadcast %cst_31 : f32 to vector<1x1xf32>
      %84 = arith.divf %83, %82 : vector<1x1xf32>
      %85 = vector.broadcast %84 : vector<1x1xf32> to vector<32x1xf32>
      %86 = arith.mulf %78, %85 : vector<32x1xf32>
      %87 = arith.addf %32, %5 : vector<1x16xf32>
      %88 = vector.broadcast %86 : vector<32x1xf32> to vector<32x16xf32>
      %89 = vector.broadcast %87 : vector<1x16xf32> to vector<32x16xf32>
      %90 = arith.mulf %88, %89 : vector<32x16xf32>
      %91 = arith.addf %77, %90 : vector<32x16xf32>
      %92 = arith.mulf %91, %91 : vector<32x16xf32>
      %cst_32 = arith.constant dense<0.000000e+00> : vector<32xf32>
      %93 = vector.multi_reduction <add>, %92, %cst_32 [1] : vector<32x16xf32> to vector<32xf32>
      %94 = vector.shape_cast %93 : vector<32xf32> to vector<32x1xf32>
      %95 = math.sqrt %94 : vector<32x1xf32>
      %c0_33 = arith.constant 0 : index
      %c0_34 = arith.constant 0 : index
      %96 = vector.load %arg7[%c0_33, %c0_34] : memref<1x1xf32, #tpu.memory_space<vmem>>, vector<1x1xf32>
      %cst_35 = arith.constant dense<0.000000e+00> : vector<1xf32>
      %97 = vector.multi_reduction <add>, %95, %cst_35 [0] : vector<32x1xf32> to vector<1xf32>
      %98 = vector.shape_cast %97 : vector<1xf32> to vector<1x1xf32>
      %99 = arith.addf %96, %98 : vector<1x1xf32>
      %c0_36 = arith.constant 0 : index
      %c0_37 = arith.constant 0 : index
      %100 = vector.load %arg7[%c0_36, %c0_37] : memref<1x1xf32, #tpu.memory_space<vmem>>, vector<1x1xf32>
      tpu.vector_store %arg7[%c0_36, %c0_37], %99 {strides = array<i32>} : memref<1x1xf32, #tpu.memory_space<vmem>>, vector<1x1xf32>,
    } else {
    }
    %c1_i32_10 = arith.constant 1 : i32
    %22 = arith.cmpi eq, %arg0, %c1_i32_10 : i32
    %c0_i32_11 = arith.constant 0 : i32
    %23 = arith.cmpi eq, %arg1, %c0_i32_11 : i32
    %24 = arith.andi %22, %23 : i1
    %25 = arith.extui %24 : i1 to i32
    %c0_i32_12 = arith.constant 0 : i32
    %26 = arith.cmpi ne, %25, %c0_i32_12 : i32
    scf.if %26 {
      %c0 = arith.constant 0 : index
      %c0_14 = arith.constant 0 : index
      %30 = vector.load %arg7[%c0, %c0_14] : memref<1x1xf32, #tpu.memory_space<vmem>>, vector<1x1xf32>
      %cst_15 = arith.constant 3.125000e-02 : f32
      %31 = vector.broadcast %cst_15 : f32 to vector<1x1xf32>
      %32 = arith.mulf %30, %31 : vector<1x1xf32>
      %c0_16 = arith.constant 0 : index
      %c0_17 = arith.constant 0 : index
      %33 = vector.load %arg4[%c0_16, %c0_17] : memref<1x1xf32, #tpu.memory_space<vmem>>, vector<1x1xf32>
      %cst_18 = arith.constant 9.99999974E-6 : f32
      %34 = vector.broadcast %cst_18 : f32 to vector<1x1xf32>
      %35 = arith.addf %32, %34 : vector<1x1xf32>
      %36 = arith.divf %33, %35 : vector<1x1xf32>
      %c0_19 = arith.constant 0 : index
      %c0_20 = arith.constant 0 : index
      %37 = vector.load %arg7[%c0_19, %c0_20] : memref<1x1xf32, #tpu.memory_space<vmem>>, vector<1x1xf32>
      tpu.vector_store %arg7[%c0_19, %c0_20], %36 {strides = array<i32>} : memref<1x1xf32, #tpu.memory_space<vmem>>, vector<1x1xf32>,
    } else {
    }
    %c2_i32 = arith.constant 2 : i32
    %27 = arith.cmpi eq, %arg0, %c2_i32 : i32
    %28 = arith.extui %27 : i1 to i32
    %c0_i32_13 = arith.constant 0 : i32
    %29 = arith.cmpi ne, %28, %c0_i32_13 : i32
    scf.if %29 {
      %c0 = arith.constant 0 : index
      %c0_14 = arith.constant 0 : index
      %c0_15 = arith.constant 0 : index
      %30 = vector.load %arg2[%c0, %c0_14, %c0_15] : memref<4x8x16xf32, #tpu.memory_space<vmem>>, vector<4x8x16xf32>
      %31 = vector.shape_cast %30 : vector<4x8x16xf32> to vector<32x16xf32>
      %c0_16 = arith.constant 0 : index
      %c0_17 = arith.constant 0 : index
      %32 = vector.load %arg6[%c0_16, %c0_17] : memref<1x16xf32, #tpu.memory_space<vmem>>, vector<1x16xf32>
      %33 = vector.extract_strided_slice %32 {offsets = [0, 0], sizes = [1, 1], strides = [1, 1]} : vector<1x16xf32> to vector<1x1xf32>
      %34 = vector.extract_strided_slice %31 {offsets = [0, 0], sizes = [32, 1], strides = [1, 1]} : vector<32x16xf32> to vector<32x1xf32>
      %35 = vector.broadcast %32 : vector<1x16xf32> to vector<32x16xf32>
      %36 = arith.mulf %31, %35 : vector<32x16xf32>
      %cst_18 = arith.constant dense<0.000000e+00> : vector<32xf32>
      %37 = vector.multi_reduction <add>, %36, %cst_18 [1] : vector<32x16xf32> to vector<32xf32>
      %38 = vector.shape_cast %37 : vector<32xf32> to vector<32x1xf32>
      %cst_19 = arith.constant 2.000000e+00 : f32
      %39 = vector.broadcast %cst_19 : f32 to vector<32x1xf32>
      %40 = arith.mulf %39, %34 : vector<32x1xf32>
      %41 = vector.broadcast %33 : vector<1x1xf32> to vector<32x1xf32>
      %42 = arith.mulf %40, %41 : vector<32x1xf32>
      %43 = arith.subf %38, %42 : vector<32x1xf32>
      %cst_20 = arith.constant 0.000000e+00 : f32
      %44 = vector.broadcast %cst_20 : f32 to vector<32x1xf32>
      %45 = arith.subf %44, %43 : vector<32x1xf32>
      %cst_21 = arith.constant 1.000000e+00 : f32
      %46 = vector.broadcast %cst_21 : f32 to vector<32x1xf32>
      %47 = arith.mulf %45, %46 : vector<32x1xf32>
      %cst_22 = arith.constant 1.000000e+00 : f32
      %48 = vector.broadcast %cst_22 : f32 to vector<32x1xf32>
      %49 = arith.maximumf %47, %48 : vector<32x1xf32>
      %50 = arith.mulf %49, %49 : vector<32x1xf32>
      %cst_23 = arith.constant 1.000000e+00 : f32
      %51 = vector.broadcast %cst_23 : f32 to vector<32x1xf32>
      %52 = arith.subf %50, %51 : vector<32x1xf32>
      %cst_24 = arith.constant 1.000000e-15 : f32
      %53 = vector.broadcast %cst_24 : f32 to vector<32x1xf32>
      %54 = arith.maximumf %52, %53 : vector<32x1xf32>
      %55 = math.sqrt %54 : vector<32x1xf32>
      %56 = arith.addf %49, %55 : vector<32x1xf32>
      %57 = math.log %56 : vector<32x1xf32>
      %cst_25 = arith.constant 1.000000e+00 : f32
      %58 = vector.broadcast %cst_25 : f32 to vector<32x1xf32>
      %59 = arith.mulf %58, %57 : vector<32x1xf32>
      %60 = vector.broadcast %47 : vector<32x1xf32> to vector<32x16xf32>
      %61 = vector.broadcast %32 : vector<1x16xf32> to vector<32x16xf32>
      %62 = arith.mulf %60, %61 : vector<32x16xf32>
      %63 = arith.subf %31, %62 : vector<32x16xf32>
      %64 = vector.extract_strided_slice %63 {offsets = [0, 0], sizes = [32, 1], strides = [1, 1]} : vector<32x16xf32> to vector<32x1xf32>
      %65 = arith.mulf %63, %63 : vector<32x16xf32>
      %cst_26 = arith.constant dense<0.000000e+00> : vector<32xf32>
      %66 = vector.multi_reduction <add>, %65, %cst_26 [1] : vector<32x16xf32> to vector<32xf32>
      %67 = vector.shape_cast %66 : vector<32xf32> to vector<32x1xf32>
      %cst_27 = arith.constant 2.000000e+00 : f32
      %68 = vector.broadcast %cst_27 : f32 to vector<32x1xf32>
      %69 = arith.mulf %68, %64 : vector<32x1xf32>
      %70 = arith.mulf %69, %64 : vector<32x1xf32>
      %71 = arith.subf %67, %70 : vector<32x1xf32>
      %cst_28 = arith.constant 9.99999993E-9 : f32
      %72 = vector.broadcast %cst_28 : f32 to vector<32x1xf32>
      %73 = arith.maximumf %71, %72 : vector<32x1xf32>
      %74 = math.rsqrt %73 : vector<32x1xf32>
      %75 = arith.mulf %59, %74 : vector<32x1xf32>
      %76 = vector.broadcast %75 : vector<32x1xf32> to vector<32x16xf32>
      %77 = arith.mulf %63, %76 : vector<32x16xf32>
      %78 = arith.mulf %64, %75 : vector<32x1xf32>
      %cst_29 = arith.constant 1.000000e+00 : f32
      %79 = vector.broadcast %cst_29 : f32 to vector<1x1xf32>
      %80 = arith.mulf %79, %33 : vector<1x1xf32>
      %cst_30 = arith.constant 1.000000e+00 : f32
      %81 = vector.broadcast %cst_30 : f32 to vector<1x1xf32>
      %82 = arith.addf %81, %80 : vector<1x1xf32>
      %cst_31 = arith.constant -1.000000e+00 : f32
      %83 = vector.broadcast %cst_31 : f32 to vector<1x1xf32>
      %84 = arith.divf %83, %82 : vector<1x1xf32>
      %85 = vector.broadcast %84 : vector<1x1xf32> to vector<32x1xf32>
      %86 = arith.mulf %78, %85 : vector<32x1xf32>
      %87 = arith.addf %32, %5 : vector<1x16xf32>
      %88 = vector.broadcast %86 : vector<32x1xf32> to vector<32x16xf32>
      %89 = vector.broadcast %87 : vector<1x16xf32> to vector<32x16xf32>
      %90 = arith.mulf %88, %89 : vector<32x16xf32>
      %91 = arith.addf %77, %90 : vector<32x16xf32>
      %c0_32 = arith.constant 0 : index
      %c0_33 = arith.constant 0 : index
      %92 = vector.load %arg7[%c0_32, %c0_33] : memref<1x1xf32, #tpu.memory_space<vmem>>, vector<1x1xf32>
      %93 = vector.broadcast %92 : vector<1x1xf32> to vector<32x16xf32>
      %94 = arith.mulf %91, %93 : vector<32x16xf32>
      %c0_34 = arith.constant 0 : index
      %c0_35 = arith.constant 0 : index
      %95 = vector.load %arg3[%c0_34, %c0_35] : memref<1x16xf32, #tpu.memory_space<vmem>>, vector<1x16xf32>
      %96 = vector.extract_strided_slice %95 {offsets = [0, 0], sizes = [1, 1], strides = [1, 1]} : vector<1x16xf32> to vector<1x1xf32>
      %97 = vector.extract_strided_slice %94 {offsets = [0, 0], sizes = [32, 1], strides = [1, 1]} : vector<32x16xf32> to vector<32x1xf32>
      %98 = vector.broadcast %95 : vector<1x16xf32> to vector<32x16xf32>
      %99 = arith.mulf %94, %98 : vector<32x16xf32>
      %cst_36 = arith.constant dense<0.000000e+00> : vector<32xf32>
      %100 = vector.multi_reduction <add>, %99, %cst_36 [1] : vector<32x16xf32> to vector<32xf32>
      %101 = vector.shape_cast %100 : vector<32xf32> to vector<32x1xf32>
      %cst_37 = arith.constant 2.000000e+00 : f32
      %102 = vector.broadcast %cst_37 : f32 to vector<32x1xf32>
      %103 = arith.mulf %102, %97 : vector<32x1xf32>
      %104 = vector.broadcast %96 : vector<1x1xf32> to vector<32x1xf32>
      %105 = arith.mulf %103, %104 : vector<32x1xf32>
      %106 = arith.subf %101, %105 : vector<32x1xf32>
      %cst_38 = arith.constant 1.000000e+00 : f32
      %107 = vector.broadcast %cst_38 : f32 to vector<1x1xf32>
      %108 = arith.mulf %107, %96 : vector<1x1xf32>
      %cst_39 = arith.constant 1.000000e+00 : f32
      %109 = vector.broadcast %cst_39 : f32 to vector<1x1xf32>
      %110 = arith.addf %109, %108 : vector<1x1xf32>
      %cst_40 = arith.constant 1.000000e+00 : f32
      %111 = vector.broadcast %cst_40 : f32 to vector<1x1xf32>
      %112 = arith.divf %111, %110 : vector<1x1xf32>
      %113 = vector.broadcast %112 : vector<1x1xf32> to vector<32x1xf32>
      %114 = arith.mulf %106, %113 : vector<32x1xf32>
      %115 = arith.addf %95, %5 : vector<1x16xf32>
      %116 = vector.broadcast %114 : vector<32x1xf32> to vector<32x16xf32>
      %117 = vector.broadcast %115 : vector<1x16xf32> to vector<32x16xf32>
      %118 = arith.mulf %116, %117 : vector<32x16xf32>
      %119 = arith.addf %94, %118 : vector<32x16xf32>
      %120 = vector.extract_strided_slice %119 {offsets = [0, 0], sizes = [32, 1], strides = [1, 1]} : vector<32x16xf32> to vector<32x1xf32>
      %121 = arith.mulf %119, %119 : vector<32x16xf32>
      %cst_41 = arith.constant dense<0.000000e+00> : vector<32xf32>
      %122 = vector.multi_reduction <add>, %121, %cst_41 [1] : vector<32x16xf32> to vector<32xf32>
      %123 = vector.shape_cast %122 : vector<32xf32> to vector<32x1xf32>
      %cst_42 = arith.constant 2.000000e+00 : f32
      %124 = vector.broadcast %cst_42 : f32 to vector<32x1xf32>
      %125 = arith.mulf %124, %120 : vector<32x1xf32>
      %126 = arith.mulf %125, %120 : vector<32x1xf32>
      %127 = arith.subf %123, %126 : vector<32x1xf32>
      %cst_43 = arith.constant 9.99999993E-9 : f32
      %128 = vector.broadcast %cst_43 : f32 to vector<32x1xf32>
      %129 = arith.maximumf %127, %128 : vector<32x1xf32>
      %130 = math.sqrt %129 : vector<32x1xf32>
      %cst_44 = arith.constant 1.000000e+00 : f32
      %131 = vector.broadcast %cst_44 : f32 to vector<32x1xf32>
      %132 = arith.mulf %130, %131 : vector<32x1xf32>
      %133 = math.exp %132 : vector<32x1xf32>
      %cst_45 = arith.constant 1.000000e+00 : f32
      %134 = vector.broadcast %cst_45 : f32 to vector<32x1xf32>
      %135 = arith.divf %134, %133 : vector<32x1xf32>
      %136 = arith.addf %133, %135 : vector<32x1xf32>
      %cst_46 = arith.constant 5.000000e-01 : f32
      %137 = vector.broadcast %cst_46 : f32 to vector<32x1xf32>
      %138 = arith.mulf %137, %136 : vector<32x1xf32>
      %139 = arith.subf %133, %135 : vector<32x1xf32>
      %cst_47 = arith.constant 5.000000e-01 : f32
      %140 = vector.broadcast %cst_47 : f32 to vector<32x1xf32>
      %141 = arith.mulf %140, %139 : vector<32x1xf32>
      %142 = vector.broadcast %138 : vector<32x1xf32> to vector<32x16xf32>
      %143 = vector.broadcast %95 : vector<1x16xf32> to vector<32x16xf32>
      %144 = arith.mulf %142, %143 : vector<32x16xf32>
      %cst_48 = arith.constant 1.000000e+00 : f32
      %145 = vector.broadcast %cst_48 : f32 to vector<32x1xf32>
      %146 = arith.mulf %145, %141 : vector<32x1xf32>
      %147 = arith.divf %146, %130 : vector<32x1xf32>
      %148 = vector.broadcast %147 : vector<32x1xf32> to vector<32x16xf32>
      %149 = arith.mulf %148, %119 : vector<32x16xf32>
      %150 = arith.addf %144, %149 : vector<32x16xf32>
      %151 = vector.shape_cast %150 : vector<32x16xf32> to vector<4x8x16xf32>
      %c0_49 = arith.constant 0 : index
      %c0_50 = arith.constant 0 : index
      %c0_51 = arith.constant 0 : index
      %152 = vector.load %arg5[%c0_49, %c0_50, %c0_51] : memref<4x8x16xf32, #tpu.memory_space<vmem>>, vector<4x8x16xf32>
      tpu.vector_store %arg5[%c0_49, %c0_50, %c0_51], %151 {strides = array<i32>} : memref<4x8x16xf32, #tpu.memory_space<vmem>>, vector<4x8x16xf32>,
    } else {
    }
    return
  }
  func.func @transform_0(%arg0: i32, %arg1: i32) -> (i32, i32, i32) {
    %c0_i32 = arith.constant 0 : i32
    %c0_i32_0 = arith.constant 0 : i32
    %c0_i32_1 = arith.constant 0 : i32
    return %arg1, %c0_i32, %c0_i32_0 : i32, i32, i32
  }
  func.func @transform_1(%arg0: i32, %arg1: i32) -> (i32, i32) {
    %c0_i32 = arith.constant 0 : i32
    %c0_i32_0 = arith.constant 0 : i32
    %c0_i32_1 = arith.constant 0 : i32
    return %c0_i32, %c0_i32_0 : i32, i32
  }
  func.func @transform_2(%arg0: i32, %arg1: i32) -> (i32, i32) {
    %c0_i32 = arith.constant 0 : i32
    %c0_i32_0 = arith.constant 0 : i32
    %c0_i32_1 = arith.constant 0 : i32
    return %c0_i32, %c0_i32_0 : i32, i32
  }
  func.func @transform_3(%arg0: i32, %arg1: i32) -> (i32, i32, i32) {
    %c2_i32 = arith.constant 2 : i32
    %0 = arith.cmpi eq, %arg0, %c2_i32 : i32
    %c0_i32 = arith.constant 0 : i32
    %1 = arith.select %0, %arg1, %c0_i32 : i32
    %c0_i32_0 = arith.constant 0 : i32
    %c0_i32_1 = arith.constant 0 : i32
    %c0_i32_2 = arith.constant 0 : i32
    return %1, %c0_i32_0, %c0_i32_1 : i32, i32, i32
  }
}

</mosaic_0001>

<llo_original>
// kernel: tpu_custom_call.1
$region0: #{tpu_custom_call.1}
  #allocation0 [shape = 'u32[]', space=smem, size = 0x4, offset = 0x4, fixed_abs, tag = 'smem constant byte address 0x4 - core index']
  #allocation1 [shape = 'u32[144,128]{1,0:T(1,128)}', space=vmem, size = 0x12000, scoped, tag = 'internal scratch']
  #allocation2 [shape = 'f32[1,16]{1,0:T(1,128)}', space=vmem, size = 0x200, scoped, tag = 'scratch operand']
  #allocation3 [shape = 'f32[1,1]{1,0:T(1,128)}', space=vmem, size = 0x200, scoped, tag = 'scratch operand']
  #allocation4 [shape = 'f32[1,1]{1,0:T(1,128)S(1)}', space=vmem, size = 0x200, scoped, tag = 'scoped memory for tpu_custom_call.1']
  %s0 = inlined_call_operand.hbm [shape: f32[4,8,16], index: 0, kind: input, shape index: {}]
  %s1 = inlined_call_operand.vmem [shape: f32[1,16], index: 1, kind: input, shape index: {}]
  %s2 = inlined_call_operand.<no memory space> [shape: f32[1,1], index: 2, kind: input, shape index: {}]
  %s3 = inlined_call_operand.hbm [shape: f32[4,8,16], index: 3, kind: output, shape index: {}]
  %s4 = sld [smem:[#allocation0]]
  $region73: #{tpu_custom_call.1} parent=0
    _
  %s6 = ssub.s32 1, %s4
  %s7 = scalar_select 0, %s6, %s4
  %v8 = vstv %s2
  %9 = vst [vmem:[#allocation4] sm:$0x1] %v8
  $region1: #{tpu_custom_call.1} parent=0
    #allocation5 [shape = 'u8[16384]{0}', space=vmem, size = 0x4000, scoped, tag = 'input window, operand 0, single buffered']
    #allocation6 [shape = 's32[2]{0}', space=sflag, size = 0x8, scoped, tag = 'scoped memory for tpu_custom_call.1']
    #allocation7 [shape = 's32[2]{0}', space=sflag, size = 0x8, scoped, tag = 'scoped memory for tpu_custom_call.1']
    #allocation8 [shape = 'u8[32768]{0}', space=vmem, size = 0x8000, scoped, tag = 'output window, operand 0']
    %10 = vsyncpa [#allocation6], 0
    %11 = vsyncpa [#allocation7], 0
    %s12 = scalar_lea.sflag [#allocation7], 1
    %13 = vsyncpa %s12, 0
    loop: start=0, step=1, limit=5
    $region2: #{tpu_custom_call.1} parent=1 // loop_pre_header
      _
    $region3: #{tpu_custom_call.1} parent=1 // loop_header
      %s15 = sphi 0, %s19
      %p16 = scmp.ge.s32.totalorder %s15, 5
      %s22 = sphi 0, %s34
      %s23 = sphi 0, %s30
      %s24 = sphi 0, %s22
      %s25 = sphi 0, %s23
      %s26 = sphi 0, %s24
      %s27 = sphi 0, %s25
      %s37 = sphi 0, %s39
      %s40 = sphi 0, %s37
      %s41 = sphi 0, %s40
      %s57 = sphi 0, %s41
      %s61 = sphi 0, %s61
      %s63 = sphi 0, %s61
      %s64 = sphi 0, %s63
      %s78 = sphi 0, %s64
      %s82 = sphi 0, %s82
      %s84 = sphi 0, %s82
      %s85 = sphi 0, %s84
      %s99 = sphi 0, %s85
      %s109 = sphi 0, %s111
      %s112 = sphi 0, %s109
      %s113 = sphi 0, %s112
      %s129 = sphi 0, %s113
    $region4: #{tpu_custom_call.1} parent=1 // loop_header_branch
      %18 = sbr.rel (%p16) target = $region8
    $region5: #{tpu_custom_call.1} parent=1 // loop_body
      %s20 = ssub.s32 %s15, 1
      %s21 = ssub.s32 %s15, 2
      %s28 = sadd.s32 1, %s23
      %p29 = scmp.ge.s32.totalorder %s28, 1
      %s30 = scalar_select %p29, 0, %s28
      %s31 = sadd.s32 1, %s22
      %s32 = scalar_select %p29, %s31, %s22
      %p33 = scmp.ge.s32.totalorder %s32, 3
      %s34 = scalar_select %p33, 0, %s32
      %s35 = ssub.s32 %s23, %s30
      %p36 = scmp.eq.s32.totalorder %s35, 0
      %s38 = sadd.s32 %s37, 1
      %s39 = scalar_select %p36, %s37, %s38
      %p42 = pneg %p36
      %p43 = scmp.eq.s32.totalorder %s15, 2
      %p44 = por %p42, %p43
      %p45 = scmp.ne.s32.totalorder %s37, %s40
      %p46 = scmp.eq.s32.totalorder %s15, 0
      %p47 = por %p45, %p46
      %p48 = scmp.ne.s32.totalorder %s37, %s40
      %p49 = scmp.eq.s32.totalorder %s20, 2
      %p50 = por %p48, %p49
      %p51 = scmp.ne.s32.totalorder %s40, %s41
      %p52 = scmp.eq.s32.totalorder %s20, 0
      %p53 = por %p51, %p52
      %p54 = scmp.ne.s32.totalorder %s40, %s41
      %p55 = scmp.eq.s32.totalorder %s21, 2
      %p56 = por %p54, %p55
      %p58 = scmp.ne.s32.totalorder %s41, %s57
      %p59 = scmp.eq.s32.totalorder %s21, 0
      %p60 = por %p58, %p59
      %s62 = sadd.s32 %s61, 1
      %p65 = scmp.eq.s32.totalorder %s15, 2
      %p66 = scmp.ne.s32.totalorder %s61, %s63
      %p67 = scmp.eq.s32.totalorder %s15, 0
      %p68 = por %p66, %p67
      %p69 = scmp.ne.s32.totalorder %s61, %s63
      %p70 = scmp.eq.s32.totalorder %s20, 2
      %p71 = por %p69, %p70
      %p72 = scmp.ne.s32.totalorder %s63, %s64
      %p73 = scmp.eq.s32.totalorder %s20, 0
      %p74 = por %p72, %p73
      %p75 = scmp.ne.s32.totalorder %s63, %s64
      %p76 = scmp.eq.s32.totalorder %s21, 2
      %p77 = por %p75, %p76
      %p79 = scmp.ne.s32.totalorder %s64, %s78
      %p80 = scmp.eq.s32.totalorder %s21, 0
      %p81 = por %p79, %p80
      %s83 = sadd.s32 %s82, 1
      %p86 = scmp.eq.s32.totalorder %s15, 2
      %p87 = scmp.ne.s32.totalorder %s82, %s84
      %p88 = scmp.eq.s32.totalorder %s15, 0
      %p89 = por %p87, %p88
      %p90 = scmp.ne.s32.totalorder %s82, %s84
      %p91 = scmp.eq.s32.totalorder %s20, 2
      %p92 = por %p90, %p91
      %p93 = scmp.ne.s32.totalorder %s84, %s85
      %p94 = scmp.eq.s32.totalorder %s20, 0
      %p95 = por %p93, %p94
      %p96 = scmp.ne.s32.totalorder %s84, %s85
      %p97 = scmp.eq.s32.totalorder %s21, 2
      %p98 = por %p96, %p97
      %p100 = scmp.ne.s32.totalorder %s85, %s99
      %p101 = scmp.eq.s32.totalorder %s21, 0
      %p102 = por %p100, %p101
      %p103 = scmp.eq.s32.totalorder %s22, 2
      %s104 = scalar_select %p103, %s23, 0
      %p105 = scmp.eq.s32.totalorder %s34, 2
      %s106 = scalar_select %p105, %s30, 0
      %s107 = ssub.s32 %s104, %s106
      %p108 = scmp.eq.s32.totalorder %s107, 0
      %s110 = sadd.s32 %s109, 1
      %s111 = scalar_select %p108, %s109, %s110
      %p114 = pneg %p108
      %p115 = scmp.eq.s32.totalorder %s15, 2
      %p116 = por %p114, %p115
      %p117 = scmp.ne.s32.totalorder %s109, %s112
      %p118 = scmp.eq.s32.totalorder %s15, 0
      %p119 = por %p117, %p118
      %p120 = scmp.ne.s32.totalorder %s109, %s112
      %p121 = scmp.eq.s32.totalorder %s20, 2
      %p122 = por %p120, %p121
      %p123 = scmp.ne.s32.totalorder %s112, %s113
      %p124 = scmp.eq.s32.totalorder %s20, 0
      %p125 = por %p123, %p124
      %p126 = scmp.ne.s32.totalorder %s112, %s113
      %p127 = scmp.eq.s32.totalorder %s21, 2
      %p128 = por %p126, %p127
      %p130 = scmp.ne.s32.totalorder %s113, %s129
      %p131 = scmp.eq.s32.totalorder %s21, 0
      %p132 = por %p130, %p131
      %p133 = scmp.le.s32.totalorder 1, %s15
      %p134 = scmp.lt.s32.totalorder %s15, 4
      %p135 = pnand %p133, %p134
      %p136 = pneg %p135
      // Predicated region
      $region9: #{tpu_custom_call.1} parent=5 // pred_check
        _
      $region10: #{tpu_custom_call.1} parent=5 // pred_check_branch
        %138 = sbr.rel (%p135) target = $region12
      $region11: #{tpu_custom_call.1} parent=5 // pred_region
        %s139 = ssub.s32 %s15, 1
        // Predicated region
        $region13: #{tpu_custom_call.1} parent=11 // pred_check
          %p140 = pneg %p53
        $region14: #{tpu_custom_call.1} parent=11 // pred_check_branch
          %142 = sbr.rel (%p140) target = $region16
        $region15: #{tpu_custom_call.1} parent=11 // pred_region
          %s143 = smul.u32 4, %s25
          %s145 = ssub.s32 512, 512
          %146 = vsyncadd [#allocation6], %s145
          %s147 = smul.addr %s143, 128
          %s148 = scalar_lea.hbm %s0, %s147
          %s149 = sshll.u32 [#allocation5], 4
          %s150 = int_to_ptr.vmem [resolvable:$true] %s149
          %155 = dma.hbm_to_vmem [thread:$0]  %s148, 512, %s150, [#allocation6], 128, 128, 8
        $region16: #{tpu_custom_call.1} parent=11 // pred_fallthru
          _
        // Predicated region
        $region17: #{tpu_custom_call.1} parent=11 // pred_check
          %p156 = pneg %p74
        $region18: #{tpu_custom_call.1} parent=11 // pred_check_branch
          %158 = sbr.rel (%p156) target = $region20
        $region19: #{tpu_custom_call.1} parent=11 // pred_region
          _
        $region20: #{tpu_custom_call.1} parent=11 // pred_fallthru
          _
        // Predicated region
        $region21: #{tpu_custom_call.1} parent=11 // pred_check
          %p159 = pneg %p95
        $region22: #{tpu_custom_call.1} parent=11 // pred_check_branch
          %161 = sbr.rel (%p159) target = $region24
        $region23: #{tpu_custom_call.1} parent=11 // pred_region
          _
        $region24: #{tpu_custom_call.1} parent=11 // pred_fallthru
          _
      $region12: #{tpu_custom_call.1} parent=5 // pred_fallthru
        _
      %p162 = scmp.lt.s32.totalorder %s15, 3
      // Predicated region
      $region25: #{tpu_custom_call.1} parent=5 // pred_check
        %p163 = pneg %p162
      $region26: #{tpu_custom_call.1} parent=5 // pred_check_branch
        %165 = sbr.rel (%p163) target = $region28
      $region27: #{tpu_custom_call.1} parent=5 // pred_region
        _
      $region28: #{tpu_custom_call.1} parent=5 // pred_fallthru
        _
      %p166 = scmp.le.s32.totalorder 1, %s15
      %p167 = scmp.lt.s32.totalorder %s15, 4
      %p168 = pnand %p166, %p167
      %p169 = pneg %p168
      // Predicated region
      $region29: #{tpu_custom_call.1} parent=5 // pred_check
        _
      $region30: #{tpu_custom_call.1} parent=5 // pred_check_branch
        %171 = sbr.rel (%p168) target = $region32
      $region31: #{tpu_custom_call.1} parent=5 // pred_region
        %s172 = ssub.s32 %s15, 1
        // Predicated region
        $region33: #{tpu_custom_call.1} parent=31 // pred_check
          %p173 = pneg %p53
        $region34: #{tpu_custom_call.1} parent=31 // pred_check_branch
          %175 = sbr.rel (%p173) target = $region36
        $region35: #{tpu_custom_call.1} parent=31 // pred_region
          %176 = dma.done [#allocation6], 512
        $region36: #{tpu_custom_call.1} parent=31 // pred_fallthru
          _
        %p177 = pneg %p53
        %p178 = pneg %p50
        %p179 = pneg %p74
        %p180 = pneg %p71
        %p181 = pneg %p95
        %p182 = pneg %p92
        %p183 = pneg %p125
        %p184 = pneg %p122
        %s185 = sand.u32 %s112, 1
        %s186 = scalar_lea.sflag [#allocation7], %s185
        %s187 = sand.u32 %s112, 1
        %s188 = smul.addr %s187, 32
        %s189 = scalar_lea.vmem [#allocation8], %s188
        %s190 = smul.u32 4, %s25
        %p191 = scmp.eq.s32.totalorder %s24, 2
        %s192 = scalar_select %p191, %s25, 0
        %s193 = smul.u32 4, %s192
        %v194 = vlaneseq
        %v195 = vand.u32 %v194, 127
        %vm196 = vcmp.eq.s32.totalorder %v195, 0
        %v197 = vsel %vm196, 1.0, 0.0
        %p198 = scmp.eq.s32.totalorder %s24, 0
        %p199 = scmp.eq.s32.totalorder %s25, 0
        %p200 = pnand %p198, %p199
        %p201 = pneg %p200
        // Predicated region
        $region37: #{tpu_custom_call.1} parent=31 // pred_check
          _
        $region38: #{tpu_custom_call.1} parent=31 // pred_check_branch
          %203 = sbr.rel (%p200) target = $region40
        $region39: #{tpu_custom_call.1} parent=31 // pred_region
          %vm204 = vcmask 122880
          %205 = vst.msk [vmem:[#allocation2] sm:$0x1] %vm204, 0.0
          %vm206 = vcmask 0
          %207 = vst.msk [vmem:[#allocation3] sm:$0x1] %vm206, 0.0
        $region40: #{tpu_custom_call.1} parent=31 // pred_fallthru
          _
        // Predicated region
        $region41: #{tpu_custom_call.1} parent=31 // pred_check
          %p208 = pneg %p198
        $region42: #{tpu_custom_call.1} parent=31 // pred_check_branch
          %210 = sbr.rel (%p208) target = $region44
        $region43: #{tpu_custom_call.1} parent=31 // pred_region
          %v211 = vld [vmem:[#allocation5] sm:$0xff]
          %v212 = vld [vmem:[#allocation5 + $0x8] sm:$0xff]
          %v213 = vld [vmem:[#allocation5 + $0x10] sm:$0xff]
          %v214 = vld [vmem:[#allocation5 + $0x18] sm:$0xff]
          %vm215 = vcmask 130048
          %v216 = vsel %vm215, %v211, 0.0
          %v217 = vrot.slane %v216, 4
          %v218 = vadd.f32 %v216, %v217
          %v219 = vrot.slane %v218, 2
          %v220 = vadd.f32 %v218, %v219
          %v221 = vrot.slane %v220, 1
          %v222 = vadd.f32 %v220, %v221
          %v223 = vsel %vm215, %v212, 0.0
          %v224 = vrot.slane %v223, 4
          %v225 = vadd.f32 %v223, %v224
          %v226 = vrot.slane %v225, 2
          %v227 = vadd.f32 %v225, %v226
          %v228 = vrot.slane %v227, 1
          %v229 = vadd.f32 %v227, %v228
          %v230 = vsel %vm215, %v213, 0.0
          %v231 = vrot.slane %v230, 4
          %v232 = vadd.f32 %v230, %v231
          %v233 = vrot.slane %v232, 2
          %v234 = vadd.f32 %v232, %v233
          %v235 = vrot.slane %v234, 1
          %v236 = vadd.f32 %v234, %v235
          %v237 = vsel %vm215, %v214, 0.0
          %v238 = vrot.slane %v237, 4
          %v239 = vadd.f32 %v237, %v238
          %v240 = vrot.slane %v239, 2
          %v241 = vadd.f32 %v239, %v240
          %v242 = vrot.slane %v241, 1
          %v243 = vadd.f32 %v241, %v242
          %v244 = vrcp.pop 8.0
          %v245 = vmul.f32 %v222, %v244
          %v246 = vmul.f32 %v229, %v244
          %v247 = vmul.f32 %v236, %v244
          %v248 = vmul.f32 %v243, %v244
          %v249 = vmul.f32 %v245, %v245
          %v250 = vmul.f32 %v246, %v246
          %v251 = vmul.f32 %v247, %v247
          %v252 = vmul.f32 %v248, %v248
          %v253 = vsel %vm215, %v249, 0.0
          %254 = vadd.xlane.f32.xlu0 %v253
          %v255 = vpop.xlane.xlu0 %254
          %v256 = vsel %vm215, %v250, 0.0
          %257 = vadd.xlane.f32.xlu0 %v256
          %v258 = vpop.xlane.xlu0 %257
          %v259 = vsel %vm215, %v251, 0.0
          %260 = vadd.xlane.f32.xlu0 %v259
          %v261 = vpop.xlane.xlu0 %260
          %v262 = vsel %vm215, %v252, 0.0
          %263 = vadd.xlane.f32.xlu0 %v262
          %v264 = vpop.xlane.xlu0 %263
          %v265 = vmul.f32 %v245, 2.0
          %v266 = vmul.f32 %v246, 2.0
          %v267 = vmul.f32 %v247, 2.0
          %v268 = vmul.f32 %v248, 2.0
          %v269 = vmul.f32 %v265, %v245
          %v270 = vmul.f32 %v266, %v246
          %v271 = vmul.f32 %v267, %v247
          %v272 = vmul.f32 %v268, %v248
          %v273 = vsub.f32 %v255, %v269
          %v274 = vsub.f32 %v258, %v270
          %v275 = vsub.f32 %v261, %v271
          %v276 = vsub.f32 %v264, %v272
          %v277 = vand.u32 2147483647, %v273
          %v278 = vand.u32 2147483647, %v274
          %v279 = vand.u32 2147483647, %v275
          %v280 = vand.u32 2147483647, %v276
          %v281 = vmax.f32 %v277, 1e-08
          %v282 = vmax.f32 %v278, 1e-08
          %v283 = vmax.f32 %v279, 1e-08
          %v284 = vmax.f32 %v280, 1e-08
          %v285 = vrsqrt.pop %v281
          %v286 = vrsqrt.pop %v282
          %v287 = vrsqrt.pop %v283
          %v288 = vrsqrt.pop %v284
          %290 = vset.pattern.permute.xlu0 0
          %291 = vperm.xlu0 %290, %v285
          %v292 = vpop.permute.xlu0 %291
          %295 = vset.pattern.permute.xlu0 0
          %296 = vperm.xlu0 %295, %v286
          %v297 = vpop.permute.xlu0 %296
          %300 = vset.pattern.permute.xlu0 0
          %301 = vperm.xlu0 %300, %v287
          %v302 = vpop.permute.xlu0 %301
          %305 = vset.pattern.permute.xlu0 0
          %306 = vperm.xlu0 %305, %v288
          %v307 = vpop.permute.xlu0 %306
          %v309 = vmul.f32 %v292, %v245
          %v310 = vmul.f32 %v297, %v246
          %v311 = vmul.f32 %v302, %v247
          %v312 = vmul.f32 %v307, %v248
          %v313 = vld [vmem:[#allocation2] sm:$0x1]
          %v314 = vsel %vm215, %v309, 0.0
          %v315 = vsel %vm215, %v310, 0.0
          %v316 = vadd.f32 %v314, %v315
          %v317 = vsel %vm215, %v311, 0.0
          %v318 = vadd.f32 %v316, %v317
          %v319 = vsel %vm215, %v312, 0.0
          %v320 = vadd.f32 %v318, %v319
          %v321 = vadd.f32 %v313, %v320
          %vm322 = vcmask 122880
          %323 = vst.msk [vmem:[#allocation2] sm:$0x1] %vm322, %v321
        $region44: #{tpu_custom_call.1} parent=31 // pred_fallthru
          _
        // Predicated region
        $region45: #{tpu_custom_call.1} parent=31 // pred_check
          _
        $region46: #{tpu_custom_call.1} parent=31 // pred_check_branch
          %325 = sbr.rel (%p200) target = $region48
        $region47: #{tpu_custom_call.1} parent=31 // pred_region
          %v326 = vld [vmem:[#allocation2] sm:$0x1]
          %v327 = vmul.f32 %v326, 0.25
          %v328 = vmul.f32 %v327, %v327
          %vm329 = vcmask 122880
          %v330 = vsel %vm329, %v328, 0.0
          %331 = vadd.xlane.f32.xlu0 %v330
          %v332 = vpop.xlane.xlu0 %331
          %v333 = vmul.f32 %v327, 2.0
          %v334 = vmul.f32 %v333, %v327
          %v335 = vsub.f32 %v332, %v334
          %v336 = vand.u32 2147483647, %v335
          %v337 = vmax.f32 %v336, 1e-08
          %v338 = vrsqrt.pop %v337
          %340 = vset.pattern.permute.xlu0 0
          %341 = vperm.xlu0 %340, %v338
          %v342 = vpop.permute.xlu0 %341
          %v344 = vmul.f32 %v342, %v327
          %345 = vst.msk [vmem:[#allocation2] sm:$0x1] %vm329, %v344
        $region48: #{tpu_custom_call.1} parent=31 // pred_fallthru
          _
        %p346 = scmp.eq.s32.totalorder %s24, 1
        // Predicated region
        $region49: #{tpu_custom_call.1} parent=31 // pred_check
          %p347 = pneg %p346
        $region50: #{tpu_custom_call.1} parent=31 // pred_check_branch
          %349 = sbr.rel (%p347) target = $region52
        $region51: #{tpu_custom_call.1} parent=31 // pred_region
          %v350 = vld [vmem:[#allocation5] sm:$0xff]
          %v351 = vld [vmem:[#allocation5 + $0x8] sm:$0xff]
          %v352 = vld [vmem:[#allocation5 + $0x10] sm:$0xff]
          %v353 = vld [vmem:[#allocation5 + $0x18] sm:$0xff]
          %v354 = vld [vmem:[#allocation2] sm:$0x1]
          %v356 = vlaneseq
          %v357 = vshrl.u32 %v356, 7
          %v358 = vsub.s32 0, %v357
          %v359 = vrot.slane %v354, %v358
          %v361 = vmul.f32 %v350, %v359
          %v362 = vmul.f32 %v351, %v359
          %v363 = vmul.f32 %v352, %v359
          %v364 = vmul.f32 %v353, %v359
          %vm365 = vcmask 130048
          %v366 = vsel %vm365, %v361, 0.0
          %367 = vadd.xlane.f32.xlu0 %v366
          %v368 = vpop.xlane.xlu0 %367
          %v369 = vsel %vm365, %v362, 0.0
          %370 = vadd.xlane.f32.xlu0 %v369
          %v371 = vpop.xlane.xlu0 %370
          %v372 = vsel %vm365, %v363, 0.0
          %373 = vadd.xlane.f32.xlu0 %v372
          %v374 = vpop.xlane.xlu0 %373
          %v375 = vsel %vm365, %v364, 0.0
          %376 = vadd.xlane.f32.xlu0 %v375
          %v377 = vpop.xlane.xlu0 %376
          %v378 = vmul.f32 %v350, 2.0
          %v379 = vmul.f32 %v351, 2.0
          %v380 = vmul.f32 %v352, 2.0
          %v381 = vmul.f32 %v353, 2.0
          %v382 = vmul.f32 %v378, %v359
          %v383 = vmul.f32 %v379, %v359
          %v384 = vmul.f32 %v380, %v359
          %v385 = vmul.f32 %v381, %v359
          %v386 = vsub.f32 %v368, %v382
          %v387 = vsub.f32 %v371, %v383
          %v388 = vsub.f32 %v374, %v384
          %v389 = vsub.f32 %v377, %v385
          %v390 = vsub.f32 0.0, %v386
          %v391 = vsub.f32 0.0, %v387
          %v392 = vsub.f32 0.0, %v388
          %v393 = vsub.f32 0.0, %v389
          %v394 = vmax.f32 %v390, 1.0
          %v395 = vmax.f32 %v391, 1.0
          %v396 = vmax.f32 %v392, 1.0
          %v397 = vmax.f32 %v393, 1.0
          %v398 = vmul.f32 %v394, %v394
          %v399 = vmul.f32 %v395, %v395
          %v400 = vmul.f32 %v396, %v396
          %v401 = vmul.f32 %v397, %v397
          %v402 = vsub.f32 %v398, 1.0
          %v403 = vsub.f32 %v399, 1.0
          %v404 = vsub.f32 %v400, 1.0
          %v405 = vsub.f32 %v401, 1.0
          %v406 = vmax.f32 %v402, 1e-15
          %v407 = vmax.f32 %v403, 1e-15
          %v408 = vmax.f32 %v404, 1e-15
          %v409 = vmax.f32 %v405, 1e-15
          %v410 = vrsqrt.pop %v406
          %v411 = vmul.f32 %v406, %v410
          %vm412 = vcmp.eq.f32.partialorder %v406, inf
          %v413 = vsel %vm412, %v406, %v411
          %vm414 = vcmp.eq.f32.partialorder %v406, 0.0
          %v415 = vand.u32 %v406, 2147483648
          %v416 = vsel %vm414, %v415, %v413
          %v417 = vrsqrt.pop %v407
          %v418 = vmul.f32 %v407, %v417
          %vm419 = vcmp.eq.f32.partialorder %v407, inf
          %v420 = vsel %vm419, %v407, %v418
          %vm421 = vcmp.eq.f32.partialorder %v407, 0.0
          %v422 = vand.u32 %v407, 2147483648
          %v423 = vsel %vm421, %v422, %v420
          %v424 = vrsqrt.pop %v408
          %v425 = vmul.f32 %v408, %v424
          %vm426 = vcmp.eq.f32.partialorder %v408, inf
          %v427 = vsel %vm426, %v408, %v425
          %vm428 = vcmp.eq.f32.partialorder %v408, 0.0
          %v429 = vand.u32 %v408, 2147483648
          %v430 = vsel %vm428, %v429, %v427
          %v431 = vrsqrt.pop %v409
          %v432 = vmul.f32 %v409, %v431
          %vm433 = vcmp.eq.f32.partialorder %v409, inf
          %v434 = vsel %vm433, %v409, %v432
          %vm435 = vcmp.eq.f32.partialorder %v409, 0.0
          %v436 = vand.u32 %v409, 2147483648
          %v437 = vsel %vm435, %v436, %v434
          %v438 = vadd.f32 %v394, %v416
          %v439 = vadd.f32 %v395, %v423
          %v440 = vadd.f32 %v396, %v430
          %v441 = vadd.f32 %v397, %v437
          %v442 = vlog2.pop %v438
          %v443 = vmul.f32 %v442, 0.6931472
          %v444 = vlog2.pop %v439
          %v445 = vmul.f32 %v444, 0.6931472
          %v446 = vlog2.pop %v440
          %v447 = vmul.f32 %v446, 0.6931472
          %v448 = vlog2.pop %v441
          %v449 = vmul.f32 %v448, 0.6931472
          %451 = vset.pattern.permute.xlu0 0
          %452 = vperm.xlu0 %451, %v390
          %v453 = vpop.permute.xlu0 %452
          %456 = vset.pattern.permute.xlu0 0
          %457 = vperm.xlu0 %456, %v391
          %v458 = vpop.permute.xlu0 %457
          %461 = vset.pattern.permute.xlu0 0
          %462 = vperm.xlu0 %461, %v392
          %v463 = vpop.permute.xlu0 %462
          %466 = vset.pattern.permute.xlu0 0
          %467 = vperm.xlu0 %466, %v393
          %v468 = vpop.permute.xlu0 %467
          %v470 = vmul.f32 %v453, %v359
          %v471 = vmul.f32 %v458, %v359
          %v472 = vmul.f32 %v463, %v359
          %v473 = vmul.f32 %v468, %v359
          %v474 = vsub.f32 %v350, %v470
          %v475 = vsub.f32 %v351, %v471
          %v476 = vsub.f32 %v352, %v472
          %v477 = vsub.f32 %v353, %v473
          %v478 = vmul.f32 %v474, %v474
          %v479 = vmul.f32 %v475, %v475
          %v480 = vmul.f32 %v476, %v476
          %v481 = vmul.f32 %v477, %v477
          %v482 = vsel %vm365, %v478, 0.0
          %483 = vadd.xlane.f32.xlu0 %v482
          %v484 = vpop.xlane.xlu0 %483
          %v485 = vsel %vm365, %v479, 0.0
          %486 = vadd.xlane.f32.xlu0 %v485
          %v487 = vpop.xlane.xlu0 %486
          %v488 = vsel %vm365, %v480, 0.0
          %489 = vadd.xlane.f32.xlu0 %v488
          %v490 = vpop.xlane.xlu0 %489
          %v491 = vsel %vm365, %v481, 0.0
          %492 = vadd.xlane.f32.xlu0 %v491
          %v493 = vpop.xlane.xlu0 %492
          %v494 = vmul.f32 %v474, 2.0
          %v495 = vmul.f32 %v475, 2.0
          %v496 = vmul.f32 %v476, 2.0
          %v497 = vmul.f32 %v477, 2.0
          %v498 = vmul.f32 %v494, %v474
          %v499 = vmul.f32 %v495, %v475
          %v500 = vmul.f32 %v496, %v476
          %v501 = vmul.f32 %v497, %v477
          %v502 = vsub.f32 %v484, %v498
          %v503 = vsub.f32 %v487, %v499
          %v504 = vsub.f32 %v490, %v500
          %v505 = vsub.f32 %v493, %v501
          %v506 = vmax.f32 %v502, 1e-08
          %v507 = vmax.f32 %v503, 1e-08
          %v508 = vmax.f32 %v504, 1e-08
          %v509 = vmax.f32 %v505, 1e-08
          %v510 = vrsqrt.pop %v506
          %v511 = vrsqrt.pop %v507
          %v512 = vrsqrt.pop %v508
          %v513 = vrsqrt.pop %v509
          %v514 = vmul.f32 %v443, %v510
          %v515 = vmul.f32 %v445, %v511
          %v516 = vmul.f32 %v447, %v512
          %v517 = vmul.f32 %v449, %v513
          %519 = vset.pattern.permute.xlu0 0
          %520 = vperm.xlu0 %519, %v514
          %v521 = vpop.permute.xlu0 %520
          %524 = vset.pattern.permute.xlu0 0
          %525 = vperm.xlu0 %524, %v515
          %v526 = vpop.permute.xlu0 %525
          %529 = vset.pattern.permute.xlu0 0
          %530 = vperm.xlu0 %529, %v516
          %v531 = vpop.permute.xlu0 %530
          %534 = vset.pattern.permute.xlu0 0
          %535 = vperm.xlu0 %534, %v517
          %v536 = vpop.permute.xlu0 %535
          %v538 = vmul.f32 %v474, %v521
          %v539 = vmul.f32 %v475, %v526
          %v540 = vmul.f32 %v476, %v531
          %v541 = vmul.f32 %v477, %v536
          %v542 = vmul.f32 %v474, %v514
          %v543 = vmul.f32 %v475, %v515
          %v544 = vmul.f32 %v476, %v516
          %v545 = vmul.f32 %v477, %v517
          %v546 = vadd.f32 %v354, 1.0
          %v547 = vrcp.pop %v546
          %v548 = vmul.f32 -1.0, %v547
          %v550 = vlaneseq
          %v551 = vshrl.u32 %v550, 7
          %v552 = vsub.s32 0, %v551
          %v553 = vrot.slane %v548, %v552
          %v555 = vmul.f32 %v542, %v553
          %v556 = vmul.f32 %v543, %v553
          %v557 = vmul.f32 %v544, %v553
          %v558 = vmul.f32 %v545, %v553
          %v559 = vadd.f32 %v354, %v197
          %561 = vset.pattern.permute.xlu0 0
          %562 = vperm.xlu0 %561, %v555
          %v563 = vpop.permute.xlu0 %562
          %566 = vset.pattern.permute.xlu0 0
          %567 = vperm.xlu0 %566, %v556
          %v568 = vpop.permute.xlu0 %567
          %571 = vset.pattern.permute.xlu0 0
          %572 = vperm.xlu0 %571, %v557
          %v573 = vpop.permute.xlu0 %572
          %576 = vset.pattern.permute.xlu0 0
          %577 = vperm.xlu0 %576, %v558
          %v578 = vpop.permute.xlu0 %577
          %v581 = vlaneseq
          %v582 = vshrl.u32 %v581, 7
          %v583 = vsub.s32 0, %v582
          %v584 = vrot.slane %v559, %v583
          %v586 = vmul.f32 %v563, %v584
          %v587 = vmul.f32 %v568, %v584
          %v588 = vmul.f32 %v573, %v584
          %v589 = vmul.f32 %v578, %v584
          %v590 = vadd.f32 %v538, %v586
          %v591 = vadd.f32 %v539, %v587
          %v592 = vadd.f32 %v540, %v588
          %v593 = vadd.f32 %v541, %v589
          %v594 = vmul.f32 %v590, %v590
          %v595 = vmul.f32 %v591, %v591
          %v596 = vmul.f32 %v592, %v592
          %v597 = vmul.f32 %v593, %v593
          %v598 = vsel %vm365, %v594, 0.0
          %599 = vadd.xlane.f32.xlu0 %v598
          %v600 = vpop.xlane.xlu0 %599
          %v601 = vsel %vm365, %v595, 0.0
          %602 = vadd.xlane.f32.xlu0 %v601
          %v603 = vpop.xlane.xlu0 %602
          %v604 = vsel %vm365, %v596, 0.0
          %605 = vadd.xlane.f32.xlu0 %v604
          %v606 = vpop.xlane.xlu0 %605
          %v607 = vsel %vm365, %v597, 0.0
          %608 = vadd.xlane.f32.xlu0 %v607
          %v609 = vpop.xlane.xlu0 %608
          %v610 = vrsqrt.pop %v600
          %v611 = vmul.f32 %v600, %v610
          %vm612 = vcmp.eq.f32.partialorder %v600, inf
          %v613 = vsel %vm612, %v600, %v611
          %vm614 = vcmp.eq.f32.partialorder %v600, 0.0
          %v615 = vand.u32 %v600, 2147483648
          %v616 = vsel %vm614, %v615, %v613
          %v617 = vrsqrt.pop %v603
          %v618 = vmul.f32 %v603, %v617
          %vm619 = vcmp.eq.f32.partialorder %v603, inf
          %v620 = vsel %vm619, %v603, %v618
          %vm621 = vcmp.eq.f32.partialorder %v603, 0.0
          %v622 = vand.u32 %v603, 2147483648
          %v623 = vsel %vm621, %v622, %v620
          %v624 = vrsqrt.pop %v606
          %v625 = vmul.f32 %v606, %v624
          %vm626 = vcmp.eq.f32.partialorder %v606, inf
          %v627 = vsel %vm626, %v606, %v625
          %vm628 = vcmp.eq.f32.partialorder %v606, 0.0
          %v629 = vand.u32 %v606, 2147483648
          %v630 = vsel %vm628, %v629, %v627
          %v631 = vrsqrt.pop %v609
          %v632 = vmul.f32 %v609, %v631
          %vm633 = vcmp.eq.f32.partialorder %v609, inf
          %v634 = vsel %vm633, %v609, %v632
          %vm635 = vcmp.eq.f32.partialorder %v609, 0.0
          %v636 = vand.u32 %v609, 2147483648
          %v637 = vsel %vm635, %v636, %v634
          %v638 = vld [vmem:[#allocation3] sm:$0x1]
          %v639 = vadd.f32 %v616, %v623
          %v640 = vadd.f32 %v639, %v630
          %v641 = vadd.f32 %v640, %v637
          %v642 = vrot.slane %v641, 4
          %v643 = vadd.f32 %v641, %v642
          %v644 = vrot.slane %v643, 2
          %v645 = vadd.f32 %v643, %v644
          %v646 = vrot.slane %v645, 1
          %v647 = vadd.f32 %v645, %v646
          %v648 = vadd.f32 %v638, %v647
          %vm649 = vcmask 0
          %650 = vst.msk [vmem:[#allocation3] sm:$0x1] %vm649, %v648
        $region52: #{tpu_custom_call.1} parent=31 // pred_fallthru
          _
        %p651 = pnand %p346, %p199
        %p652 = pneg %p651
        // Predicated region
        $region53: #{tpu_custom_call.1} parent=31 // pred_check
          _
        $region54: #{tpu_custom_call.1} parent=31 // pred_check_branch
          %654 = sbr.rel (%p651) target = $region56
        $region55: #{tpu_custom_call.1} parent=31 // pred_region
          %v655 = vld [vmem:[#allocation3] sm:$0x1]
          %v656 = vmul.f32 %v655, 0.03125
          %v657 = vld [vmem:[#allocation4] sm:$0x1]
          %v658 = vadd.f32 %v656, 1e-05
          %v659 = vrcp.pop %v658
          %v660 = vmul.f32 %v657, %v659
          %vm661 = vcmask 0
          %662 = vst.msk [vmem:[#allocation3] sm:$0x1] %vm661, %v660
        $region56: #{tpu_custom_call.1} parent=31 // pred_fallthru
          _
        %p663 = scmp.eq.s32.totalorder %s24, 2
        // Predicated region
        $region57: #{tpu_custom_call.1} parent=31 // pred_check
          %p664 = pneg %p663
        $region58: #{tpu_custom_call.1} parent=31 // pred_check_branch
          %666 = sbr.rel (%p664) target = $region60
        $region59: #{tpu_custom_call.1} parent=31 // pred_region
          %v667 = vld [vmem:[#allocation5] sm:$0xff]
          %v668 = vld [vmem:[#allocation5 + $0x8] sm:$0xff]
          %v669 = vld [vmem:[#allocation5 + $0x10] sm:$0xff]
          %v670 = vld [vmem:[#allocation5 + $0x18] sm:$0xff]
          %v671 = vld [vmem:[#allocation2] sm:$0x1]
          %v673 = vlaneseq
          %v674 = vshrl.u32 %v673, 7
          %v675 = vsub.s32 0, %v674
          %v676 = vrot.slane %v671, %v675
          %v678 = vmul.f32 %v667, %v676
          %v679 = vmul.f32 %v668, %v676
          %v680 = vmul.f32 %v669, %v676
          %v681 = vmul.f32 %v670, %v676
          %vm682 = vcmask 130048
          %v683 = vsel %vm682, %v678, 0.0
          %684 = vadd.xlane.f32.xlu0 %v683
          %v685 = vpop.xlane.xlu0 %684
          %v686 = vsel %vm682, %v679, 0.0
          %687 = vadd.xlane.f32.xlu0 %v686
          %v688 = vpop.xlane.xlu0 %687
          %v689 = vsel %vm682, %v680, 0.0
          %690 = vadd.xlane.f32.xlu0 %v689
          %v691 = vpop.xlane.xlu0 %690
          %v692 = vsel %vm682, %v681, 0.0
          %693 = vadd.xlane.f32.xlu0 %v692
          %v694 = vpop.xlane.xlu0 %693
          %v695 = vmul.f32 %v667, 2.0
          %v696 = vmul.f32 %v668, 2.0
          %v697 = vmul.f32 %v669, 2.0
          %v698 = vmul.f32 %v670, 2.0
          %v699 = vmul.f32 %v695, %v676
          %v700 = vmul.f32 %v696, %v676
          %v701 = vmul.f32 %v697, %v676
          %v702 = vmul.f32 %v698, %v676
          %v703 = vsub.f32 %v685, %v699
          %v704 = vsub.f32 %v688, %v700
          %v705 = vsub.f32 %v691, %v701
          %v706 = vsub.f32 %v694, %v702
          %v707 = vsub.f32 0.0, %v703
          %v708 = vsub.f32 0.0, %v704
          %v709 = vsub.f32 0.0, %v705
          %v710 = vsub.f32 0.0, %v706
          %v711 = vmax.f32 %v707, 1.0
          %v712 = vmax.f32 %v708, 1.0
          %v713 = vmax.f32 %v709, 1.0
          %v714 = vmax.f32 %v710, 1.0
          %v715 = vmul.f32 %v711, %v711
          %v716 = vmul.f32 %v712, %v712
          %v717 = vmul.f32 %v713, %v713
          %v718 = vmul.f32 %v714, %v714
          %v719 = vsub.f32 %v715, 1.0
          %v720 = vsub.f32 %v716, 1.0
          %v721 = vsub.f32 %v717, 1.0
          %v722 = vsub.f32 %v718, 1.0
          %v723 = vmax.f32 %v719, 1e-15
          %v724 = vmax.f32 %v720, 1e-15
          %v725 = vmax.f32 %v721, 1e-15
          %v726 = vmax.f32 %v722, 1e-15
          %v727 = vrsqrt.pop %v723
          %v728 = vmul.f32 %v723, %v727
          %vm729 = vcmp.eq.f32.partialorder %v723, inf
          %v730 = vsel %vm729, %v723, %v728
          %vm731 = vcmp.eq.f32.partialorder %v723, 0.0
          %v732 = vand.u32 %v723, 2147483648
          %v733 = vsel %vm731, %v732, %v730
          %v734 = vrsqrt.pop %v724
          %v735 = vmul.f32 %v724, %v734
          %vm736 = vcmp.eq.f32.partialorder %v724, inf
          %v737 = vsel %vm736, %v724, %v735
          %vm738 = vcmp.eq.f32.partialorder %v724, 0.0
          %v739 = vand.u32 %v724, 2147483648
          %v740 = vsel %vm738, %v739, %v737
          %v741 = vrsqrt.pop %v725
          %v742 = vmul.f32 %v725, %v741
          %vm743 = vcmp.eq.f32.partialorder %v725, inf
          %v744 = vsel %vm743, %v725, %v742
          %vm745 = vcmp.eq.f32.partialorder %v725, 0.0
          %v746 = vand.u32 %v725, 2147483648
          %v747 = vsel %vm745, %v746, %v744
          %v748 = vrsqrt.pop %v726
          %v749 = vmul.f32 %v726, %v748
          %vm750 = vcmp.eq.f32.partialorder %v726, inf
          %v751 = vsel %vm750, %v726, %v749
          %vm752 = vcmp.eq.f32.partialorder %v726, 0.0
          %v753 = vand.u32 %v726, 2147483648
          %v754 = vsel %vm752, %v753, %v751
          %v755 = vadd.f32 %v711, %v733
          %v756 = vadd.f32 %v712, %v740
          %v757 = vadd.f32 %v713, %v747
          %v758 = vadd.f32 %v714, %v754
          %v759 = vlog2.pop %v755
          %v760 = vmul.f32 %v759, 0.6931472
          %v761 = vlog2.pop %v756
          %v762 = vmul.f32 %v761, 0.6931472
          %v763 = vlog2.pop %v757
          %v764 = vmul.f32 %v763, 0.6931472
          %v765 = vlog2.pop %v758
          %v766 = vmul.f32 %v765, 0.6931472
          %768 = vset.pattern.permute.xlu0 0
          %769 = vperm.xlu0 %768, %v707
          %v770 = vpop.permute.xlu0 %769
          %773 = vset.pattern.permute.xlu0 0
          %774 = vperm.xlu0 %773, %v708
          %v775 = vpop.permute.xlu0 %774
          %778 = vset.pattern.permute.xlu0 0
          %779 = vperm.xlu0 %778, %v709
          %v780 = vpop.permute.xlu0 %779
          %783 = vset.pattern.permute.xlu0 0
          %784 = vperm.xlu0 %783, %v710
          %v785 = vpop.permute.xlu0 %784
          %v787 = vmul.f32 %v770, %v676
          %v788 = vmul.f32 %v775, %v676
          %v789 = vmul.f32 %v780, %v676
          %v790 = vmul.f32 %v785, %v676
          %v791 = vsub.f32 %v667, %v787
          %v792 = vsub.f32 %v668, %v788
          %v793 = vsub.f32 %v669, %v789
          %v794 = vsub.f32 %v670, %v790
          %v795 = vmul.f32 %v791, %v791
          %v796 = vmul.f32 %v792, %v792
          %v797 = vmul.f32 %v793, %v793
          %v798 = vmul.f32 %v794, %v794
          %v799 = vsel %vm682, %v795, 0.0
          %800 = vadd.xlane.f32.xlu0 %v799
          %v801 = vpop.xlane.xlu0 %800
          %v802 = vsel %vm682, %v796, 0.0
          %803 = vadd.xlane.f32.xlu0 %v802
          %v804 = vpop.xlane.xlu0 %803
          %v805 = vsel %vm682, %v797, 0.0
          %806 = vadd.xlane.f32.xlu0 %v805
          %v807 = vpop.xlane.xlu0 %806
          %v808 = vsel %vm682, %v798, 0.0
          %809 = vadd.xlane.f32.xlu0 %v808
          %v810 = vpop.xlane.xlu0 %809
          %v811 = vmul.f32 %v791, 2.0
          %v812 = vmul.f32 %v792, 2.0
          %v813 = vmul.f32 %v793, 2.0
          %v814 = vmul.f32 %v794, 2.0
          %v815 = vmul.f32 %v811, %v791
          %v816 = vmul.f32 %v812, %v792
          %v817 = vmul.f32 %v813, %v793
          %v818 = vmul.f32 %v814, %v794
          %v819 = vsub.f32 %v801, %v815
          %v820 = vsub.f32 %v804, %v816
          %v821 = vsub.f32 %v807, %v817
          %v822 = vsub.f32 %v810, %v818
          %v823 = vmax.f32 %v819, 1e-08
          %v824 = vmax.f32 %v820, 1e-08
          %v825 = vmax.f32 %v821, 1e-08
          %v826 = vmax.f32 %v822, 1e-08
          %v827 = vrsqrt.pop %v823
          %v828 = vrsqrt.pop %v824
          %v829 = vrsqrt.pop %v825
          %v830 = vrsqrt.pop %v826
          %v831 = vmul.f32 %v760, %v827
          %v832 = vmul.f32 %v762, %v828
          %v833 = vmul.f32 %v764, %v829
          %v834 = vmul.f32 %v766, %v830
          %836 = vset.pattern.permute.xlu0 0
          %837 = vperm.xlu0 %836, %v831
          %v838 = vpop.permute.xlu0 %837
          %841 = vset.pattern.permute.xlu0 0
          %842 = vperm.xlu0 %841, %v832
          %v843 = vpop.permute.xlu0 %842
          %846 = vset.pattern.permute.xlu0 0
          %847 = vperm.xlu0 %846, %v833
          %v848 = vpop.permute.xlu0 %847
          %851 = vset.pattern.permute.xlu0 0
          %852 = vperm.xlu0 %851, %v834
          %v853 = vpop.permute.xlu0 %852
          %v855 = vmul.f32 %v791, %v838
          %v856 = vmul.f32 %v792, %v843
          %v857 = vmul.f32 %v793, %v848
          %v858 = vmul.f32 %v794, %v853
          %v859 = vmul.f32 %v791, %v831
          %v860 = vmul.f32 %v792, %v832
          %v861 = vmul.f32 %v793, %v833
          %v862 = vmul.f32 %v794, %v834
          %v863 = vadd.f32 %v671, 1.0
          %v864 = vrcp.pop %v863
          %v865 = vmul.f32 -1.0, %v864
          %v867 = vlaneseq
          %v868 = vshrl.u32 %v867, 7
          %v869 = vsub.s32 0, %v868
          %v870 = vrot.slane %v865, %v869
          %v872 = vmul.f32 %v859, %v870
          %v873 = vmul.f32 %v860, %v870
          %v874 = vmul.f32 %v861, %v870
          %v875 = vmul.f32 %v862, %v870
          %v876 = vadd.f32 %v671, %v197
          %878 = vset.pattern.permute.xlu0 0
          %879 = vperm.xlu0 %878, %v872
          %v880 = vpop.permute.xlu0 %879
          %883 = vset.pattern.permute.xlu0 0
          %884 = vperm.xlu0 %883, %v873
          %v885 = vpop.permute.xlu0 %884
          %888 = vset.pattern.permute.xlu0 0
          %889 = vperm.xlu0 %888, %v874
          %v890 = vpop.permute.xlu0 %889
          %893 = vset.pattern.permute.xlu0 0
          %894 = vperm.xlu0 %893, %v875
          %v895 = vpop.permute.xlu0 %894
          %v898 = vlaneseq
          %v899 = vshrl.u32 %v898, 7
          %v900 = vsub.s32 0, %v899
          %v901 = vrot.slane %v876, %v900
          %v903 = vmul.f32 %v880, %v901
          %v904 = vmul.f32 %v885, %v901
          %v905 = vmul.f32 %v890, %v901
          %v906 = vmul.f32 %v895, %v901
          %v907 = vadd.f32 %v855, %v903
          %v908 = vadd.f32 %v856, %v904
          %v909 = vadd.f32 %v857, %v905
          %v910 = vadd.f32 %v858, %v906
          %v911 = vld [vmem:[#allocation3] sm:$0x1]
          %v913 = vlaneseq
          %v914 = vshrl.u32 %v913, 7
          %v915 = vsub.s32 0, %v914
          %v916 = vrot.slane %v911, %v915
          %917 = vset.pattern.permute.xlu0 0
          %918 = vperm.xlu0 %917, %v916
          %v919 = vpop.permute.xlu0 %918
          %v921 = vmul.f32 %v907, %v919
          %v922 = vmul.f32 %v908, %v919
          %v923 = vmul.f32 %v909, %v919
          %v924 = vmul.f32 %v910, %v919
          %v925 = vld [vmem:[%s1] sm:$0x1]
          %v927 = vlaneseq
          %v928 = vshrl.u32 %v927, 7
          %v929 = vsub.s32 0, %v928
          %v930 = vrot.slane %v925, %v929
          %v932 = vmul.f32 %v921, %v930
          %v933 = vmul.f32 %v922, %v930
          %v934 = vmul.f32 %v923, %v930
          %v935 = vmul.f32 %v924, %v930
          %v936 = vsel %vm682, %v932, 0.0
          %937 = vadd.xlane.f32.xlu0 %v936
          %v938 = vpop.xlane.xlu0 %937
          %v939 = vsel %vm682, %v933, 0.0
          %940 = vadd.xlane.f32.xlu0 %v939
          %v941 = vpop.xlane.xlu0 %940
          %v942 = vsel %vm682, %v934, 0.0
          %943 = vadd.xlane.f32.xlu0 %v942
          %v944 = vpop.xlane.xlu0 %943
          %v945 = vsel %vm682, %v935, 0.0
          %946 = vadd.xlane.f32.xlu0 %v945
          %v947 = vpop.xlane.xlu0 %946
          %v948 = vmul.f32 %v921, 2.0
          %v949 = vmul.f32 %v922, 2.0
          %v950 = vmul.f32 %v923, 2.0
          %v951 = vmul.f32 %v924, 2.0
          %v952 = vmul.f32 %v948, %v930
          %v953 = vmul.f32 %v949, %v930
          %v954 = vmul.f32 %v950, %v930
          %v955 = vmul.f32 %v951, %v930
          %v956 = vsub.f32 %v938, %v952
          %v957 = vsub.f32 %v941, %v953
          %v958 = vsub.f32 %v944, %v954
          %v959 = vsub.f32 %v947, %v955
          %v960 = vadd.f32 %v925, 1.0
          %v961 = vrcp.pop %v960
          %v962 = vmul.f32 1.0, %v961
          %v964 = vlaneseq
          %v965 = vshrl.u32 %v964, 7
          %v966 = vsub.s32 0, %v965
          %v967 = vrot.slane %v962, %v966
          %v969 = vmul.f32 %v956, %v967
          %v970 = vmul.f32 %v957, %v967
          %v971 = vmul.f32 %v958, %v967
          %v972 = vmul.f32 %v959, %v967
          %v973 = vadd.f32 %v925, %v197
          %975 = vset.pattern.permute.xlu0 0
          %976 = vperm.xlu0 %975, %v969
          %v977 = vpop.permute.xlu0 %976
          %980 = vset.pattern.permute.xlu0 0
          %981 = vperm.xlu0 %980, %v970
          %v982 = vpop.permute.xlu0 %981
          %985 = vset.pattern.permute.xlu0 0
          %986 = vperm.xlu0 %985, %v971
          %v987 = vpop.permute.xlu0 %986
          %990 = vset.pattern.permute.xlu0 0
          %991 = vperm.xlu0 %990, %v972
          %v992 = vpop.permute.xlu0 %991
          %v995 = vlaneseq
          %v996 = vshrl.u32 %v995, 7
          %v997 = vsub.s32 0, %v996
          %v998 = vrot.slane %v973, %v997
          %v1000 = vmul.f32 %v977, %v998
          %v1001 = vmul.f32 %v982, %v998
          %v1002 = vmul.f32 %v987, %v998
          %v1003 = vmul.f32 %v992, %v998
          %v1004 = vadd.f32 %v921, %v1000
          %v1005 = vadd.f32 %v922, %v1001
          %v1006 = vadd.f32 %v923, %v1002
          %v1007 = vadd.f32 %v924, %v1003
          %v1008 = vmul.f32 %v1004, %v1004
          %v1009 = vmul.f32 %v1005, %v1005
          %v1010 = vmul.f32 %v1006, %v1006
          %v1011 = vmul.f32 %v1007, %v1007
          %v1012 = vsel %vm682, %v1008, 0.0
          %1013 = vadd.xlane.f32.xlu0 %v1012
          %v1014 = vpop.xlane.xlu0 %1013
          %v1015 = vsel %vm682, %v1009, 0.0
          %1016 = vadd.xlane.f32.xlu0 %v1015
          %v1017 = vpop.xlane.xlu0 %1016
          %v1018 = vsel %vm682, %v1010, 0.0
          %1019 = vadd.xlane.f32.xlu0 %v1018
          %v1020 = vpop.xlane.xlu0 %1019
          %v1021 = vsel %vm682, %v1011, 0.0
          %1022 = vadd.xlane.f32.xlu0 %v1021
          %v1023 = vpop.xlane.xlu0 %1022
          %v1024 = vmul.f32 %v1004, 2.0
          %v1025 = vmul.f32 %v1005, 2.0
          %v1026 = vmul.f32 %v1006, 2.0
          %v1027 = vmul.f32 %v1007, 2.0
          %v1028 = vmul.f32 %v1024, %v1004
          %v1029 = vmul.f32 %v1025, %v1005
          %v1030 = vmul.f32 %v1026, %v1006
          %v1031 = vmul.f32 %v1027, %v1007
          %v1032 = vsub.f32 %v1014, %v1028
          %v1033 = vsub.f32 %v1017, %v1029
          %v1034 = vsub.f32 %v1020, %v1030
          %v1035 = vsub.f32 %v1023, %v1031
          %v1036 = vmax.f32 %v1032, 1e-08
          %v1037 = vmax.f32 %v1033, 1e-08
          %v1038 = vmax.f32 %v1034, 1e-08
          %v1039 = vmax.f32 %v1035, 1e-08
          %v1040 = vrsqrt.pop %v1036
          %v1041 = vmul.f32 %v1036, %v1040
          %vm1042 = vcmp.eq.f32.partialorder %v1036, inf
          %v1043 = vsel %vm1042, %v1036, %v1041
          %vm1044 = vcmp.eq.f32.partialorder %v1036, 0.0
          %v1045 = vand.u32 %v1036, 2147483648
          %v1046 = vsel %vm1044, %v1045, %v1043
          %v1047 = vrsqrt.pop %v1037
          %v1048 = vmul.f32 %v1037, %v1047
          %vm1049 = vcmp.eq.f32.partialorder %v1037, inf
          %v1050 = vsel %vm1049, %v1037, %v1048
          %vm1051 = vcmp.eq.f32.partialorder %v1037, 0.0
          %v1052 = vand.u32 %v1037, 2147483648
          %v1053 = vsel %vm1051, %v1052, %v1050
          %v1054 = vrsqrt.pop %v1038
          %v1055 = vmul.f32 %v1038, %v1054
          %vm1056 = vcmp.eq.f32.partialorder %v1038, inf
          %v1057 = vsel %vm1056, %v1038, %v1055
          %vm1058 = vcmp.eq.f32.partialorder %v1038, 0.0
          %v1059 = vand.u32 %v1038, 2147483648
          %v1060 = vsel %vm1058, %v1059, %v1057
          %v1061 = vrsqrt.pop %v1039
          %v1062 = vmul.f32 %v1039, %v1061
          %vm1063 = vcmp.eq.f32.partialorder %v1039, inf
          %v1064 = vsel %vm1063, %v1039, %v1062
          %vm1065 = vcmp.eq.f32.partialorder %v1039, 0.0
          %v1066 = vand.u32 %v1039, 2147483648
          %v1067 = vsel %vm1065, %v1066, %v1064
          %v1068 = vmul.f32 %v1046, 1.442695
          %v1069 = vpow.pop %v1068
          %v1070 = vmul.f32 %v1053, 1.442695
          %v1071 = vpow.pop %v1070
          %v1072 = vmul.f32 %v1060, 1.442695
          %v1073 = vpow.pop %v1072
          %v1074 = vmul.f32 %v1067, 1.442695
          %v1075 = vpow.pop %v1074
          %v1076 = vrcp.pop %v1069
          %v1077 = vmul.f32 1.0, %v1076
          %v1078 = vrcp.pop %v1071
          %v1079 = vmul.f32 1.0, %v1078
          %v1080 = vrcp.pop %v1073
          %v1081 = vmul.f32 1.0, %v1080
          %v1082 = vrcp.pop %v1075
          %v1083 = vmul.f32 1.0, %v1082
          %v1084 = vadd.f32 %v1069, %v1077
          %v1085 = vadd.f32 %v1071, %v1079
          %v1086 = vadd.f32 %v1073, %v1081
          %v1087 = vadd.f32 %v1075, %v1083
          %v1088 = vmul.f32 %v1084, 0.5
          %v1089 = vmul.f32 %v1085, 0.5
          %v1090 = vmul.f32 %v1086, 0.5
          %v1091 = vmul.f32 %v1087, 0.5
          %v1092 = vsub.f32 %v1069, %v1077
          %v1093 = vsub.f32 %v1071, %v1079
          %v1094 = vsub.f32 %v1073, %v1081
          %v1095 = vsub.f32 %v1075, %v1083
          %v1096 = vmul.f32 %v1092, 0.5
          %v1097 = vmul.f32 %v1093, 0.5
          %v1098 = vmul.f32 %v1094, 0.5
          %v1099 = vmul.f32 %v1095, 0.5
          %1101 = vset.pattern.permute.xlu0 0
          %1102 = vperm.xlu0 %1101, %v1088
          %v1103 = vpop.permute.xlu0 %1102
          %1106 = vset.pattern.permute.xlu0 0
          %1107 = vperm.xlu0 %1106, %v1089
          %v1108 = vpop.permute.xlu0 %1107
          %1111 = vset.pattern.permute.xlu0 0
          %1112 = vperm.xlu0 %1111, %v1090
          %v1113 = vpop.permute.xlu0 %1112
          %1116 = vset.pattern.permute.xlu0 0
          %1117 = vperm.xlu0 %1116, %v1091
          %v1118 = vpop.permute.xlu0 %1117
          %v1120 = vmul.f32 %v1103, %v930
          %v1121 = vmul.f32 %v1108, %v930
          %v1122 = vmul.f32 %v1113, %v930
          %v1123 = vmul.f32 %v1118, %v930
          %v1124 = vrcp.pop %v1046
          %v1125 = vmul.f32 %v1096, %v1124
          %v1126 = vrcp.pop %v1053
          %v1127 = vmul.f32 %v1097, %v1126
          %v1128 = vrcp.pop %v1060
          %v1129 = vmul.f32 %v1098, %v1128
          %v1130 = vrcp.pop %v1067
          %v1131 = vmul.f32 %v1099, %v1130
          %1133 = vset.pattern.permute.xlu0 0
          %1134 = vperm.xlu0 %1133, %v1125
          %v1135 = vpop.permute.xlu0 %1134
          %1138 = vset.pattern.permute.xlu0 0
          %1139 = vperm.xlu0 %1138, %v1127
          %v1140 = vpop.permute.xlu0 %1139
          %1143 = vset.pattern.permute.xlu0 0
          %1144 = vperm.xlu0 %1143, %v1129
          %v1145 = vpop.permute.xlu0 %1144
          %1148 = vset.pattern.permute.xlu0 0
          %1149 = vperm.xlu0 %1148, %v1131
          %v1150 = vpop.permute.xlu0 %1149
          %v1152 = vmul.f32 %v1135, %v1004
          %v1153 = vmul.f32 %v1140, %v1005
          %v1154 = vmul.f32 %v1145, %v1006
          %v1155 = vmul.f32 %v1150, %v1007
          %v1156 = vadd.f32 %v1120, %v1152
          %v1157 = vadd.f32 %v1121, %v1153
          %v1158 = vadd.f32 %v1122, %v1154
          %v1159 = vadd.f32 %v1123, %v1155
          %1160 = vst.msk [vmem:[%s189] sm:$0xff] %vm682, %v1156
          %1161 = vst.msk [vmem:[%s189 + $0x8] sm:$0xff] %vm682, %v1157
          %1162 = vst.msk [vmem:[%s189 + $0x10] sm:$0xff] %vm682, %v1158
          %1163 = vst.msk [vmem:[%s189 + $0x18] sm:$0xff] %vm682, %v1159
        $region60: #{tpu_custom_call.1} parent=31 // pred_fallthru
          _
        %s1164 = sand.u32 %s112, 1
        %s1165 = scalar_lea.sflag [#allocation7], %s1164
        %s1166 = sand.u32 %s112, 1
        %s1167 = smul.addr %s1166, 32
        %s1168 = scalar_lea.vmem [#allocation8], %s1167
        // Predicated region
        $region61: #{tpu_custom_call.1} parent=31 // pred_check
          %p1169 = pneg %p122
        $region62: #{tpu_custom_call.1} parent=31 // pred_check_branch
          %1171 = sbr.rel (%p1169) target = $region64
        $region63: #{tpu_custom_call.1} parent=31 // pred_region
          %p1172 = scmp.eq.s32.totalorder %s24, 2
          %s1173 = scalar_select %p1172, %s25, 0
          %s1174 = smul.u32 4, %s1173
          %s1176 = ssub.s32 512, 512
          %1177 = vsyncadd %s1165, %s1176
          %s1178 = smul.addr %s1174, 128
          %s1179 = scalar_lea.hbm %s3, %s1178
          %s1180 = sshll.u32 %s1168, 4
          %s1181 = int_to_ptr.vmem [resolvable:$true] %s1180
          %1186 = dma.vmem_to_hbm [thread:$0]  %s1181, 512, %s1179, %s1165, 128, 128, 8
        $region64: #{tpu_custom_call.1} parent=31 // pred_fallthru
          _
      $region32: #{tpu_custom_call.1} parent=5 // pred_fallthru
        _
      %p1187 = scmp.le.s32.totalorder 2, %s15
      // Predicated region
      $region65: #{tpu_custom_call.1} parent=5 // pred_check
        %p1188 = pneg %p1187
      $region66: #{tpu_custom_call.1} parent=5 // pred_check_branch
        %1190 = sbr.rel (%p1188) target = $region68
      $region67: #{tpu_custom_call.1} parent=5 // pred_region
        %s1191 = ssub.s32 %s15, 2
        // Predicated region
        $region69: #{tpu_custom_call.1} parent=67 // pred_check
          %p1192 = pneg %p128
        $region70: #{tpu_custom_call.1} parent=67 // pred_check_branch
          %1194 = sbr.rel (%p1192) target = $region72
        $region71: #{tpu_custom_call.1} parent=67 // pred_region
          %s1195 = sand.u32 %s113, 1
          %s1196 = scalar_lea.sflag [#allocation7], %s1195
          %s1197 = sand.u32 %s113, 1
          %s1198 = smul.addr %s1197, 32
          %s1199 = scalar_lea.vmem [#allocation8], %s1198
          %1200 = dma.done %s1196, 512
        $region72: #{tpu_custom_call.1} parent=67 // pred_fallthru
          _
      $region68: #{tpu_custom_call.1} parent=5 // pred_fallthru
        _
    $region6: #{tpu_custom_call.1} parent=1 // loop_footer
      %s19 = sadd.s32 1, %s15
    $region7: #{tpu_custom_call.1} parent=1 // loop_footer_branch
      %14 = sbr.rel target = $region3
    $region8: #{tpu_custom_call.1} parent=1 // loop_exit
      _
    %1201 = vsyncpa [#allocation6], 1
    %s1202 = scalar_lea.sflag [#allocation6], 1
    %1203 = vsyncpa %s1202, 1
    %1204 = vsyncpa [#allocation7], 1
    %s1205 = scalar_lea.sflag [#allocation7], 1
    %1206 = vsyncpa %s1205, 1

</llo_original>
